<compile_context>
chip_gen: v7x
topology: tpu7x:2x2x1
jax: 0.10.0
libtpu: 0.0.40
codegen_flags: <defaults>
</compile_context>

<pallas_src>
import jax
import jax.numpy as jnp
from jax.experimental import pallas as pl
from jax.experimental.pallas import tpu as pltpu


def _round_up(v, m):
    return (v + m - 1) // m * m


def irl_abmil_kernel(
    # ---- inputs ----
    x_ref,        # (TN, L)    one instance tile of one bag (mxu dtype)
    w_emb_ref,    # (L, L)     mxu dtype
    b_emb_ref,    # (1, L)     f32
    gamma_ref,    # (1, L)     f32
    beta_ref,     # (1, L)     f32
    w_fused_ref,  # (L, Fp)    [W_enc_cls|pad , W_a1|pad , W_cls|pad], mxu dtype
    b_fused_ref,  # (1, Fp)    f32 (cls-segment bias is zero, added at finalize)
    w_a2_ref,     # (1, Dp)    f32, torch Linear(D,1).weight as a padded row
    b_a2_ref,     # (1, 1)     f32 scalar in SMEM
    b_cls_ref,    # (1, Cp)    f32
    # ---- outputs ----
    y_ref,        # (1, Cp)    bag logits (written on the last instance tile)
    enc_ref,      # (TN, Cp)   per-instance encoder logits (lane-dense)
    # ---- scratch (online-softmax state, persists across instance tiles) ----
    m_sc,         # (1, 1)  running max of attention scores
    l_sc,         # (1, 1)  running sum of exp(scores - max)
    acc_sc,       # (1, Cp) running sum of exp(scores - max) * (h @ W_cls)
):
    t = pl.program_id(1)
    nt = pl.num_programs(1)
    Cp = b_cls_ref.shape[1]
    Dp = w_a2_ref.shape[1]

    @pl.when(t == 0)
    def _init():
        m_sc[...] = jnp.full_like(m_sc, -jnp.inf)
        l_sc[...] = jnp.zeros_like(l_sc)
        acc_sc[...] = jnp.zeros_like(acc_sc)

    # ---- encoder Linear(L, L): MXU operands in mxu dtype, f32 accumulate ----
    # (Dropout is identity at inference.)
    h = jnp.dot(x_ref[...], w_emb_ref[...], preferred_element_type=jnp.float32)
    h = h + b_emb_ref[...]

    # ---- LayerNorm over features: ONE pass (sum & sum-of-squares), f32 ----
    mean = jnp.mean(h, axis=-1, keepdims=True)
    ex2 = jnp.mean(h * h, axis=-1, keepdims=True)
    var = jnp.maximum(ex2 - mean * mean, 0.0)
    h = (h - mean) * jax.lax.rsqrt(var + 1e-5)
    h = h * gamma_ref[...] + beta_ref[...]

    # ---- fused projection [enc | attn-hidden | cls] in one MXU pass.
    # Every segment starts on a 128-lane boundary, so the slices are free.
    p = jnp.dot(h.astype(w_fused_ref.dtype), w_fused_ref[...],
                preferred_element_type=jnp.float32)
    p = p + b_fused_ref[...]
    enc = p[:, :Cp]                      # (TN, Cp) encoder logits (padded)
    a_hid = jnp.tanh(p[:, Cp:Cp + Dp])   # (TN, Dp) attention hidden (f32)
    cls = p[:, Cp + Dp:]                 # (TN, Cp) bag-classifier logits

    # Lane-dense store (Cp is a multiple of 128); un-padded in the wrapper.
    enc_ref[...] = enc.astype(enc_ref.dtype)

    # ---- attention scores: VPU reduce (avoids a width-1 MXU matmul), f32 ----
    a = jnp.sum(a_hid * w_a2_ref[...], axis=-1, keepdims=True) + b_a2_ref[0, 0]

    # ---- online softmax + attention pooling across instance tiles (f32) ----
    m_tile = jnp.max(a, axis=0, keepdims=True)        # (1, 1)
    m_new = jnp.maximum(m_sc[...], m_tile)            # (1, 1)
    scale = jnp.exp(m_sc[...] - m_new)                # (1, 1)
    e = jnp.exp(a - m_new)                            # (TN, 1)
    l_sc[...] = scale * l_sc[...] + jnp.sum(e, axis=0, keepdims=True)
    acc_sc[...] = scale * acc_sc[...] + jnp.sum(e * cls, axis=0, keepdims=True)
    m_sc[...] = m_new

    @pl.when(t == nt - 1)
    def _finalize():
        l = l_sc[...]
        inv = pl.reciprocal(l, approx=True)           # EUP slot
        inv = inv * (2.0 - l * inv)                   # Newton step -> ~f32 accurate
        y_ref[...] = (acc_sc[...] * inv + b_cls_ref[...]).astype(y_ref.dtype)


def irl_abmil_forward(x, params, *, tile_n=None, mxu_dtype=jnp.bfloat16):
    """x: (B, N, L) batch of bags, or (N, L) for a single bag (torch x[0]).

    mxu_dtype: dtype fed to the MXU (x / w_emb / fused weight).  Defaults to
    bf16 (~2x MXU throughput, half the HBM traffic for x and half the VMEM for
    resident weights); all LayerNorm / softmax / accumulator math stays f32.
    """
    squeeze_bag = x.ndim == 2
    if squeeze_bag:
        x = x[None]
    B, N, L = x.shape
    C = params["w_cls"].shape[1]
    D = params["w_a1"].shape[1]
    f32 = jnp.float32

    mxu_dtype = jnp.dtype(mxu_dtype)
    sub = 16 if mxu_dtype.itemsize == 2 else 8   # sublane packing constraint

    if tile_n is None:
        tile_n = N
        for cand in (2048, 1024, 512, 256, 128, 64, 32, 16, 8):
            if cand <= N and cand % sub == 0 and N % cand == 0:
                tile_n = cand
                break
    assert N % tile_n == 0, "N must be divisible by tile_n"
    assert tile_n == N or tile_n % sub == 0, (
        f"tile_n must be N or a multiple of {sub} for {mxu_dtype} inputs")
    # TODO(synk): production shapes should use tile_n that is a multiple of 256
    # (v6e/v7x) / 128 (v5e) and add -inf score masking for ragged/padded bags.
    nt = N // tile_n

    # 128-lane-aligned fused projection segments (zero-padded columns are
    # exactly zero through the whole pipeline, so they never affect results).
    Cp = _round_up(C, 128)
    Dp = _round_up(D, 128)
    Fp = 2 * Cp + Dp

    def pad_cols(a, width):
        return jnp.pad(a, ((0, 0), (0, width - a.shape[1])))

    w_fused = jnp.concatenate(
        [pad_cols(params["w_enc_cls"], Cp),
         pad_cols(params["w_a1"], Dp),
         pad_cols(params["w_cls"], Cp)], axis=1).astype(mxu_dtype)
    # b_cls is added once at finalize (attn sums to 1), so its slot is zeros.
    b_fused = jnp.concatenate(
        [pad_cols(params["b_enc_cls"].astype(f32), Cp),
         pad_cols(params["b_a1"].astype(f32), Dp),
         jnp.zeros((1, Cp), f32)], axis=1)
    w_a2 = pad_cols(params["w_a2"].astype(f32), Dp)
    b_cls = pad_cols(params["b_cls"].astype(f32), Cp)

    x_in = x.astype(mxu_dtype)
    w_emb = params["w_emb"].astype(mxu_dtype)
    b_emb = params["b_emb"].astype(f32)
    gamma = params["gamma"].astype(f32)
    beta = params["beta"].astype(f32)
    b_a2 = params["b_a2"].astype(f32).reshape(1, 1)

    # Explicitly named index maps (no late-binding closures).
    def x_map(b, t):
        return (b, t, 0)

    def const2d(b, t):
        return (0, 0)

    def y_map(b, t):
        return (b, 0, 0)

    out_specs = (
        pl.BlockSpec((None, 1, Cp), y_map),           # y (lane-dense)
        pl.BlockSpec((None, tile_n, Cp), x_map),      # enc (lane-dense)
    )
    out_shape = (
        jax.ShapeDtypeStruct((B, 1, Cp), f32),
        jax.ShapeDtypeStruct((B, N, Cp), f32),
    )
    scratch_shapes = [
        pltpu.VMEM((1, 1), f32),    # running max
        pltpu.VMEM((1, 1), f32),    # running denom
        pltpu.VMEM((1, Cp), f32),   # running attn-weighted cls logits
    ]

    flops = 2 * B * N * L * (L + Fp)
    transcendentals = B * N * (Dp + 2)                # tanh + exp + rsqrt
    bytes_accessed = int(
        B * N * L * mxu_dtype.itemsize                # x
        + B * N * Cp * 4 + B * Cp * 4                 # enc, y
        + (L * L + L * Fp) * mxu_dtype.itemsize       # matmul weights
        + (4 * L + 2 * Fp + Dp + Cp + 1) * 4)         # small vectors / scalars
    cost = pl.CostEstimate(flops=flops, transcendentals=transcendentals,
                           bytes_accessed=bytes_accessed)

    compiler_params = pltpu.CompilerParams(
        # bags are independent (megacore-sharded on v7x); instance tiles are an
        # online-softmax reduction and stay on one core.
        dimension_semantics=("parallel", "arbitrary"),
        # above the 16/32 MiB scoped default, within v7x's 64 MiB physical VMEM.
        vmem_limit_bytes=64 * 1024 * 1024,
    )
    # TODO(synk): when B == 1 on v7x, split the instance axis across the two
    # TensorCores (per-core partial m/l/acc stats + small combine) so half the
    # chip is not idle.

    def run(single_buffer_consts):
        resident = (dict(pipeline_mode=pl.Buffered(1))
                    if single_buffer_consts else {})
        in_specs = [
            pl.BlockSpec((None, tile_n, L), x_map),             # x (streams)
            pl.BlockSpec((L, L), const2d, **resident),          # w_emb
            pl.BlockSpec((1, L), const2d, **resident),          # b_emb
            pl.BlockSpec((1, L), const2d, **resident),          # gamma
            pl.BlockSpec((1, L), const2d, **resident),          # beta
            pl.BlockSpec((L, Fp), const2d, **resident),         # w_fused
            pl.BlockSpec((1, Fp), const2d, **resident),         # b_fused
            pl.BlockSpec((1, Dp), const2d, **resident),         # w_a2
            pl.BlockSpec(memory_space=pltpu.MemorySpace.SMEM),  # b_a2 (scalar)
            pl.BlockSpec((1, Cp), const2d, **resident),         # b_cls
        ]
        return pl.pallas_call(
            irl_abmil_kernel,
            grid=(B, nt),
            in_specs=in_specs,
            out_specs=out_specs,
            out_shape=out_shape,
            scratch_shapes=scratch_shapes,
            compiler_params=compiler_params,
            cost_estimate=cost,
        )(x_in, w_emb, b_emb, gamma, beta, w_fused, b_fused, w_a2, b_a2, b_cls)

    try:
        # Grid-resident constants single-buffered (constant index_map -> one
        # fetch; halves their VMEM footprint, freeing room for larger tile_n).
        y, enc = run(single_buffer_consts=True)
    except Exception:
        # Fallback for Pallas versions without BlockSpec.pipeline_mode.
        y, enc = run(single_buffer_consts=False)

    y = y[:, 0, :C]
    enc = enc[:, :, :C]
    if squeeze_bag:
        return y, enc[0]
    return y, enc


def make_params(key, L, D, C):
    ks = jax.random.split(key, 8)
    s = 0.05
    return {
        "w_emb": s * jax.random.normal(ks[0], (L, L), jnp.float32),
        "b_emb": s * jax.random.normal(ks[1], (1, L), jnp.float32),
        "gamma": jnp.ones((1, L), jnp.float32),
        "beta": jnp.zeros((1, L), jnp.float32),
        "w_enc_cls": s * jax.random.normal(ks[2], (L, C), jnp.float32),
        "b_enc_cls": s * jax.random.normal(ks[3], (1, C), jnp.float32),
        "w_a1": s * jax.random.normal(ks[4], (L, D), jnp.float32),
        "b_a1": s * jax.random.normal(ks[5], (1, D), jnp.float32),
        "w_a2": s * jax.random.normal(ks[6], (1, D), jnp.float32),
        "b_a2": jnp.zeros((1, 1), jnp.float32),
        "w_cls": s * jax.random.normal(ks[7], (L, C), jnp.float32),
        "b_cls": jnp.zeros((1, C), jnp.float32),
    }


def reference_forward_single(x, p):
    """Pure-JAX f32 reference for a single bag x: (N, L)."""
    h = x @ p["w_emb"] + p["b_emb"]
    mean = jnp.mean(h, axis=-1, keepdims=True)
    var = jnp.mean((h - mean) ** 2, axis=-1, keepdims=True)
    h = (h - mean) / jnp.sqrt(var + 1e-5) * p["gamma"] + p["beta"]
    enc = h @ p["w_enc_cls"] + p["b_enc_cls"]
    a = jnp.tanh(h @ p["w_a1"] + p["b_a1"]) @ p["w_a2"].T + p["b_a2"][0, 0]
    attn = jax.nn.softmax(a, axis=0)
    m = attn.T @ h
    y = m @ p["w_cls"] + p["b_cls"]
    return y, enc   # (1, C), (N, C)


if __name__ == "__main__":
    L, C = 32, 4
    D = L // 2
    key = jax.random.PRNGKey(0)
    kx1, kx2, kp = jax.random.split(key, 3)
    params = make_params(kp, L, D, C)

    # --- f32-MXU path: 2 bags x 16 instances, tile_n=8 so the online-softmax
    #     reduction over 2 instance tiles is exercised; tight tolerance. ---
    B1, N1 = 2, 16
    x1 = jax.random.normal(kx1, (B1, N1, L), jnp.float32)
    y1, enc1 = irl_abmil_forward(x1, params, tile_n=8, mxu_dtype=jnp.float32)
    jax.block_until_ready((y1, enc1))
    y1_ref, enc1_ref = jax.vmap(lambda xb: reference_forward_single(xb, params))(x1)
    y1_ref = y1_ref.reshape(B1, C)
    assert jnp.allclose(enc1, enc1_ref, atol=1e-4, rtol=1e-4), "f32 instance logits mismatch"
    assert jnp.allclose(y1, y1_ref, atol=1e-3, rtol=1e-3), "f32 bag logits mismatch"

    # --- bf16-MXU path (production default): 2 bags x 32 instances,
    #     tile_n=16 (bf16 sublane packing); elementwise math stays f32. ---
    B2, N2 = 2, 32
    x2 = jax.random.normal(kx2, (B2, N2, L), jnp.float32)
    y2, enc2 = irl_abmil_forward(x2, params, tile_n=16, mxu_dtype=jnp.bfloat16)
    jax.block_until_ready((y2, enc2))
    y2_ref, enc2_ref = jax.vmap(lambda xb: reference_forward_single(xb, params))(x2)
    y2_ref = y2_ref.reshape(B2, C)
    assert jnp.allclose(enc2, enc2_ref, atol=3e-2, rtol=3e-2), "bf16 instance logits mismatch"
    assert jnp.allclose(y2, y2_ref, atol=3e-2, rtol=3e-2), "bf16 bag logits mismatch"

    print("KERNEL_OK")
</pallas_src>

<mosaic_0001>
module attributes {stable_mosaic.version = 11 : i64} {
  func.func @irl_abmil_kernel(%arg0: i32, %arg1: i32, %arg2: memref<1x8x32xf32, #tpu.memory_space<vmem>>, %arg3: memref<32x32xf32, #tpu.memory_space<vmem>>, %arg4: memref<1x32xf32, #tpu.memory_space<vmem>>, %arg5: memref<1x32xf32, #tpu.memory_space<vmem>>, %arg6: memref<1x32xf32, #tpu.memory_space<vmem>>, %arg7: memref<32x384xf32, #tpu.memory_space<vmem>>, %arg8: memref<1x384xf32, #tpu.memory_space<vmem>>, %arg9: memref<1x128xf32, #tpu.memory_space<vmem>>, %arg10: memref<1x1xf32, #tpu.memory_space<smem>>, %arg11: memref<1x128xf32, #tpu.memory_space<vmem>>, %arg12: memref<1x1x128xf32, #tpu.memory_space<vmem>>, %arg13: memref<1x8x128xf32, #tpu.memory_space<vmem>>, %arg14: memref<1x1xf32, #tpu.memory_space<vmem>>, %arg15: memref<1x1xf32, #tpu.memory_space<vmem>>, %arg16: memref<1x128xf32, #tpu.memory_space<vmem>>) attributes {dimension_semantics = [#tpu.dimension_semantics<parallel>, #tpu.dimension_semantics<arbitrary>], iteration_bounds = array<i64: 2, 2>, scalar_prefetch = 0 : i64, scratch_operands = 3 : i64, tpu.core_type = #tpu.core_type<tc>, window_params = [{transform_indices = @transform_0, window_bounds = array<i64: 1, 8, 32>}, {pipeline_mode = #tpu.pipeline_mode<synchronous>, transform_indices = @transform_1, window_bounds = array<i64: 32, 32>}, {pipeline_mode = #tpu.pipeline_mode<synchronous>, transform_indices = @transform_2, window_bounds = array<i64: 1, 32>}, {pipeline_mode = #tpu.pipeline_mode<synchronous>, transform_indices = @transform_3, window_bounds = array<i64: 1, 32>}, {pipeline_mode = #tpu.pipeline_mode<synchronous>, transform_indices = @transform_4, window_bounds = array<i64: 1, 32>}, {pipeline_mode = #tpu.pipeline_mode<synchronous>, transform_indices = @transform_5, window_bounds = array<i64: 32, 384>}, {pipeline_mode = #tpu.pipeline_mode<synchronous>, transform_indices = @transform_6, window_bounds = array<i64: 1, 384>}, {pipeline_mode = #tpu.pipeline_mode<synchronous>, transform_indices = @transform_7, window_bounds = array<i64: 1, 128>}, {transform_indices = @transform_8, window_bounds = array<i64: 1, 1>}, {pipeline_mode = #tpu.pipeline_mode<synchronous>, transform_indices = @transform_9, window_bounds = array<i64: 1, 128>}, {transform_indices = @transform_10, window_bounds = array<i64: 1, 1, 128>}, {transform_indices = @transform_11, window_bounds = array<i64: 1, 8, 128>}]} {
    %c0_i32 = arith.constant 0 : i32
    %0 = arith.cmpi eq, %arg1, %c0_i32 : i32
    %1 = arith.extui %0 : i1 to i32
    %c0_i32_0 = arith.constant 0 : i32
    %2 = arith.cmpi ne, %1, %c0_i32_0 : i32
    scf.if %2 {
      %cst_48 = arith.constant 0xFF800000 : f32
      %85 = vector.broadcast %cst_48 : f32 to vector<1x1xf32>
      %c0_49 = arith.constant 0 : index
      %c0_50 = arith.constant 0 : index
      %86 = vector.load %arg14[%c0_49, %c0_50] : memref<1x1xf32, #tpu.memory_space<vmem>>, vector<1x1xf32>
      tpu.vector_store %arg14[%c0_49, %c0_50], %85 {strides = array<i32>} : memref<1x1xf32, #tpu.memory_space<vmem>>, vector<1x1xf32>,
      %cst_51 = arith.constant 0.000000e+00 : f32
      %87 = vector.broadcast %cst_51 : f32 to vector<1x1xf32>
      %c0_52 = arith.constant 0 : index
      %c0_53 = arith.constant 0 : index
      %88 = vector.load %arg15[%c0_52, %c0_53] : memref<1x1xf32, #tpu.memory_space<vmem>>, vector<1x1xf32>
      tpu.vector_store %arg15[%c0_52, %c0_53], %87 {strides = array<i32>} : memref<1x1xf32, #tpu.memory_space<vmem>>, vector<1x1xf32>,
      %cst_54 = arith.constant 0.000000e+00 : f32
      %89 = vector.broadcast %cst_54 : f32 to vector<1x128xf32>
      %c0_55 = arith.constant 0 : index
      %c0_56 = arith.constant 0 : index
      %90 = vector.load %arg16[%c0_55, %c0_56] : memref<1x128xf32, #tpu.memory_space<vmem>>, vector<1x128xf32>
      tpu.vector_store %arg16[%c0_55, %c0_56], %89 {strides = array<i32>} : memref<1x128xf32, #tpu.memory_space<vmem>>, vector<1x128xf32>,
    } else {
    }
    %c0 = arith.constant 0 : index
    %c0_1 = arith.constant 0 : index
    %c0_2 = arith.constant 0 : index
    %3 = vector.load %arg2[%c0, %c0_1, %c0_2] : memref<1x8x32xf32, #tpu.memory_space<vmem>>, vector<1x8x32xf32>
    %4 = vector.shape_cast %3 : vector<1x8x32xf32> to vector<8x32xf32>
    %c0_3 = arith.constant 0 : index
    %c0_4 = arith.constant 0 : index
    %5 = vector.load %arg3[%c0_3, %c0_4] : memref<32x32xf32, #tpu.memory_space<vmem>>, vector<32x32xf32>
    %cst = arith.constant dense<0.000000e+00> : vector<8x32xf32>
    %6 = tpu.matmul %4, %5, %cst {dimension_numbers = #tpu.dot_dimension_numbers<[1], [0], [0], [1], [0, 0, 1, 1], [], []>} : vector<8x32xf32>, vector<32x32xf32>, vector<8x32xf32> -> vector<8x32xf32>
    %c0_5 = arith.constant 0 : index
    %c0_6 = arith.constant 0 : index
    %7 = vector.load %arg4[%c0_5, %c0_6] : memref<1x32xf32, #tpu.memory_space<vmem>>, vector<1x32xf32>
    %8 = vector.broadcast %7 : vector<1x32xf32> to vector<8x32xf32>
    %9 = arith.addf %6, %8 : vector<8x32xf32>
    %cst_7 = arith.constant dense<0.000000e+00> : vector<8xf32>
    %10 = vector.multi_reduction <add>, %9, %cst_7 [1] : vector<8x32xf32> to vector<8xf32>
    %11 = vector.shape_cast %10 : vector<8xf32> to vector<8x1xf32>
    %cst_8 = arith.constant 3.200000e+01 : f32
    %12 = vector.broadcast %cst_8 : f32 to vector<8x1xf32>
    %13 = arith.divf %11, %12 : vector<8x1xf32>
    %14 = arith.mulf %9, %9 : vector<8x32xf32>
    %cst_9 = arith.constant dense<0.000000e+00> : vector<8xf32>
    %15 = vector.multi_reduction <add>, %14, %cst_9 [1] : vector<8x32xf32> to vector<8xf32>
    %16 = vector.shape_cast %15 : vector<8xf32> to vector<8x1xf32>
    %cst_10 = arith.constant 3.200000e+01 : f32
    %17 = vector.broadcast %cst_10 : f32 to vector<8x1xf32>
    %18 = arith.divf %16, %17 : vector<8x1xf32>
    %19 = arith.mulf %13, %13 : vector<8x1xf32>
    %20 = arith.subf %18, %19 : vector<8x1xf32>
    %cst_11 = arith.constant 0.000000e+00 : f32
    %21 = vector.broadcast %cst_11 : f32 to vector<8x1xf32>
    %22 = arith.maximumf %20, %21 : vector<8x1xf32>
    %23 = vector.broadcast %13 : vector<8x1xf32> to vector<8x32xf32>
    %24 = arith.subf %9, %23 : vector<8x32xf32>
    %cst_12 = arith.constant 9.99999974E-6 : f32
    %25 = vector.broadcast %cst_12 : f32 to vector<8x1xf32>
    %26 = arith.addf %22, %25 : vector<8x1xf32>
    %27 = math.rsqrt %26 : vector<8x1xf32>
    %28 = vector.broadcast %27 : vector<8x1xf32> to vector<8x32xf32>
    %29 = arith.mulf %24, %28 : vector<8x32xf32>
    %c0_13 = arith.constant 0 : index
    %c0_14 = arith.constant 0 : index
    %30 = vector.load %arg5[%c0_13, %c0_14] : memref<1x32xf32, #tpu.memory_space<vmem>>, vector<1x32xf32>
    %31 = vector.broadcast %30 : vector<1x32xf32> to vector<8x32xf32>
    %32 = arith.mulf %29, %31 : vector<8x32xf32>
    %c0_15 = arith.constant 0 : index
    %c0_16 = arith.constant 0 : index
    %33 = vector.load %arg6[%c0_15, %c0_16] : memref<1x32xf32, #tpu.memory_space<vmem>>, vector<1x32xf32>
    %34 = vector.broadcast %33 : vector<1x32xf32> to vector<8x32xf32>
    %35 = arith.addf %32, %34 : vector<8x32xf32>
    %c0_17 = arith.constant 0 : index
    %c0_18 = arith.constant 0 : index
    %36 = vector.load %arg7[%c0_17, %c0_18] : memref<32x384xf32, #tpu.memory_space<vmem>>, vector<32x384xf32>
    %cst_19 = arith.constant dense<0.000000e+00> : vector<8x384xf32>
    %37 = tpu.matmul %35, %36, %cst_19 {dimension_numbers = #tpu.dot_dimension_numbers<[1], [0], [0], [1], [0, 0, 1, 1], [], []>} : vector<8x32xf32>, vector<32x384xf32>, vector<8x384xf32> -> vector<8x384xf32>
    %c0_20 = arith.constant 0 : index
    %c0_21 = arith.constant 0 : index
    %38 = vector.load %arg8[%c0_20, %c0_21] : memref<1x384xf32, #tpu.memory_space<vmem>>, vector<1x384xf32>
    %39 = vector.broadcast %38 : vector<1x384xf32> to vector<8x384xf32>
    %40 = arith.addf %37, %39 : vector<8x384xf32>
    %41 = vector.extract_strided_slice %40 {offsets = [0, 0], sizes = [8, 128], strides = [1, 1]} : vector<8x384xf32> to vector<8x128xf32>
    %42 = vector.extract_strided_slice %40 {offsets = [0, 128], sizes = [8, 128], strides = [1, 1]} : vector<8x384xf32> to vector<8x128xf32>
    %43 = math.tanh %42 : vector<8x128xf32>
    %44 = vector.extract_strided_slice %40 {offsets = [0, 256], sizes = [8, 128], strides = [1, 1]} : vector<8x384xf32> to vector<8x128xf32>
    %c0_22 = arith.constant 0 : index
    %c0_23 = arith.constant 0 : index
    %c0_24 = arith.constant 0 : index
    %45 = vector.load %arg13[%c0_22, %c0_23, %c0_24] : memref<1x8x128xf32, #tpu.memory_space<vmem>>, vector<1x8x128xf32>
    %46 = vector.shape_cast %45 : vector<1x8x128xf32> to vector<8x128xf32>
    %47 = vector.shape_cast %41 : vector<8x128xf32> to vector<1x8x128xf32>
    tpu.vector_store %arg13[%c0_22, %c0_23, %c0_24], %47 {strides = array<i32>} : memref<1x8x128xf32, #tpu.memory_space<vmem>>, vector<1x8x128xf32>,
    %c0_25 = arith.constant 0 : index
    %c0_26 = arith.constant 0 : index
    %48 = vector.load %arg9[%c0_25, %c0_26] : memref<1x128xf32, #tpu.memory_space<vmem>>, vector<1x128xf32>
    %49 = vector.broadcast %48 : vector<1x128xf32> to vector<8x128xf32>
    %50 = arith.mulf %43, %49 : vector<8x128xf32>
    %cst_27 = arith.constant dense<0.000000e+00> : vector<8xf32>
    %51 = vector.multi_reduction <add>, %50, %cst_27 [1] : vector<8x128xf32> to vector<8xf32>
    %52 = vector.shape_cast %51 : vector<8xf32> to vector<8x1xf32>
    %c0_28 = arith.constant 0 : index
    %c0_29 = arith.constant 0 : index
    %53 = memref.load %arg10[%c0_28, %c0_29] : memref<1x1xf32, #tpu.memory_space<smem>>
    %54 = vector.broadcast %53 : f32 to vector<8x1xf32>
    %55 = arith.addf %52, %54 : vector<8x1xf32>
    %cst_30 = arith.constant dense<0xFF800000> : vector<1xf32>
    %56 = vector.multi_reduction <maximumf>, %55, %cst_30 [0] : vector<8x1xf32> to vector<1xf32>
    %57 = vector.shape_cast %56 : vector<1xf32> to vector<1x1xf32>
    %c0_31 = arith.constant 0 : index
    %c0_32 = arith.constant 0 : index
    %58 = vector.load %arg14[%c0_31, %c0_32] : memref<1x1xf32, #tpu.memory_space<vmem>>, vector<1x1xf32>
    %59 = arith.maximumf %58, %57 : vector<1x1xf32>
    %c0_33 = arith.constant 0 : index
    %c0_34 = arith.constant 0 : index
    %60 = vector.load %arg14[%c0_33, %c0_34] : memref<1x1xf32, #tpu.memory_space<vmem>>, vector<1x1xf32>
    %61 = arith.subf %60, %59 : vector<1x1xf32>
    %62 = math.exp %61 : vector<1x1xf32>
    %63 = vector.broadcast %59 : vector<1x1xf32> to vector<8x1xf32>
    %64 = arith.subf %55, %63 : vector<8x1xf32>
    %65 = math.exp %64 : vector<8x1xf32>
    %c0_35 = arith.constant 0 : index
    %c0_36 = arith.constant 0 : index
    %66 = vector.load %arg15[%c0_35, %c0_36] : memref<1x1xf32, #tpu.memory_space<vmem>>, vector<1x1xf32>
    %67 = arith.mulf %62, %66 : vector<1x1xf32>
    %cst_37 = arith.constant dense<0.000000e+00> : vector<1xf32>
    %68 = vector.multi_reduction <add>, %65, %cst_37 [0] : vector<8x1xf32> to vector<1xf32>
    %69 = vector.shape_cast %68 : vector<1xf32> to vector<1x1xf32>
    %70 = arith.addf %67, %69 : vector<1x1xf32>
    %c0_38 = arith.constant 0 : index
    %c0_39 = arith.constant 0 : index
    %71 = vector.load %arg15[%c0_38, %c0_39] : memref<1x1xf32, #tpu.memory_space<vmem>>, vector<1x1xf32>
    tpu.vector_store %arg15[%c0_38, %c0_39], %70 {strides = array<i32>} : memref<1x1xf32, #tpu.memory_space<vmem>>, vector<1x1xf32>,
    %c0_40 = arith.constant 0 : index
    %c0_41 = arith.constant 0 : index
    %72 = vector.load %arg16[%c0_40, %c0_41] : memref<1x128xf32, #tpu.memory_space<vmem>>, vector<1x128xf32>
    %73 = vector.broadcast %62 : vector<1x1xf32> to vector<1x128xf32>
    %74 = arith.mulf %73, %72 : vector<1x128xf32>
    %75 = vector.broadcast %65 : vector<8x1xf32> to vector<8x128xf32>
    %76 = arith.mulf %75, %44 : vector<8x128xf32>
    %cst_42 = arith.constant dense<0.000000e+00> : vector<128xf32>
    %77 = vector.multi_reduction <add>, %76, %cst_42 [0] : vector<8x128xf32> to vector<128xf32>
    %78 = vector.shape_cast %77 : vector<128xf32> to vector<1x128xf32>
    %79 = arith.addf %74, %78 : vector<1x128xf32>
    %c0_43 = arith.constant 0 : index
    %c0_44 = arith.constant 0 : index
    %80 = vector.load %arg16[%c0_43, %c0_44] : memref<1x128xf32, #tpu.memory_space<vmem>>, vector<1x128xf32>
    tpu.vector_store %arg16[%c0_43, %c0_44], %79 {strides = array<i32>} : memref<1x128xf32, #tpu.memory_space<vmem>>, vector<1x128xf32>,
    %c0_45 = arith.constant 0 : index
    %c0_46 = arith.constant 0 : index
    %81 = vector.load %arg14[%c0_45, %c0_46] : memref<1x1xf32, #tpu.memory_space<vmem>>, vector<1x1xf32>
    tpu.vector_store %arg14[%c0_45, %c0_46], %59 {strides = array<i32>} : memref<1x1xf32, #tpu.memory_space<vmem>>, vector<1x1xf32>,
    %c1_i32 = arith.constant 1 : i32
    %82 = arith.cmpi eq, %arg1, %c1_i32 : i32
    %83 = arith.extui %82 : i1 to i32
    %c0_i32_47 = arith.constant 0 : i32
    %84 = arith.cmpi ne, %83, %c0_i32_47 : i32
    scf.if %84 {
      %c0_48 = arith.constant 0 : index
      %c0_49 = arith.constant 0 : index
      %85 = vector.load %arg15[%c0_48, %c0_49] : memref<1x1xf32, #tpu.memory_space<vmem>>, vector<1x1xf32>
      %86 = tpu.reciprocal %85 {approx = true} : vector<1x1xf32> -> vector<1x1xf32>
      %87 = arith.mulf %85, %86 : vector<1x1xf32>
      %cst_50 = arith.constant 2.000000e+00 : f32
      %88 = vector.broadcast %cst_50 : f32 to vector<1x1xf32>
      %89 = arith.subf %88, %87 : vector<1x1xf32>
      %90 = arith.mulf %86, %89 : vector<1x1xf32>
      %c0_51 = arith.constant 0 : index
      %c0_52 = arith.constant 0 : index
      %91 = vector.load %arg16[%c0_51, %c0_52] : memref<1x128xf32, #tpu.memory_space<vmem>>, vector<1x128xf32>
      %92 = vector.broadcast %90 : vector<1x1xf32> to vector<1x128xf32>
      %93 = arith.mulf %91, %92 : vector<1x128xf32>
      %c0_53 = arith.constant 0 : index
      %c0_54 = arith.constant 0 : index
      %94 = vector.load %arg11[%c0_53, %c0_54] : memref<1x128xf32, #tpu.memory_space<vmem>>, vector<1x128xf32>
      %95 = arith.addf %93, %94 : vector<1x128xf32>
      %c0_55 = arith.constant 0 : index
      %c0_56 = arith.constant 0 : index
      %c0_57 = arith.constant 0 : index
      %96 = vector.load %arg12[%c0_55, %c0_56, %c0_57] : memref<1x1x128xf32, #tpu.memory_space<vmem>>, vector<1x1x128xf32>
      %97 = vector.shape_cast %96 : vector<1x1x128xf32> to vector<1x128xf32>
      %98 = vector.shape_cast %95 : vector<1x128xf32> to vector<1x1x128xf32>
      tpu.vector_store %arg12[%c0_55, %c0_56, %c0_57], %98 {strides = array<i32>} : memref<1x1x128xf32, #tpu.memory_space<vmem>>, vector<1x1x128xf32>,
    } else {
    }
    return
  }
  func.func @transform_0(%arg0: i32, %arg1: i32) -> (i32, i32, i32) {
    %c0_i32 = arith.constant 0 : i32
    %c0_i32_0 = arith.constant 0 : i32
    return %arg0, %arg1, %c0_i32 : i32, i32, i32
  }
  func.func @transform_1(%arg0: i32, %arg1: i32) -> (i32, i32) {
    %c0_i32 = arith.constant 0 : i32
    %c0_i32_0 = arith.constant 0 : i32
    %c0_i32_1 = arith.constant 0 : i32
    return %c0_i32, %c0_i32_0 : i32, i32
  }
  func.func @transform_2(%arg0: i32, %arg1: i32) -> (i32, i32) {
    %c0_i32 = arith.constant 0 : i32
    %c0_i32_0 = arith.constant 0 : i32
    %c0_i32_1 = arith.constant 0 : i32
    return %c0_i32, %c0_i32_0 : i32, i32
  }
  func.func @transform_3(%arg0: i32, %arg1: i32) -> (i32, i32) {
    %c0_i32 = arith.constant 0 : i32
    %c0_i32_0 = arith.constant 0 : i32
    %c0_i32_1 = arith.constant 0 : i32
    return %c0_i32, %c0_i32_0 : i32, i32
  }
  func.func @transform_4(%arg0: i32, %arg1: i32) -> (i32, i32) {
    %c0_i32 = arith.constant 0 : i32
    %c0_i32_0 = arith.constant 0 : i32
    %c0_i32_1 = arith.constant 0 : i32
    return %c0_i32, %c0_i32_0 : i32, i32
  }
  func.func @transform_5(%arg0: i32, %arg1: i32) -> (i32, i32) {
    %c0_i32 = arith.constant 0 : i32
    %c0_i32_0 = arith.constant 0 : i32
    %c0_i32_1 = arith.constant 0 : i32
    return %c0_i32, %c0_i32_0 : i32, i32
  }
  func.func @transform_6(%arg0: i32, %arg1: i32) -> (i32, i32) {
    %c0_i32 = arith.constant 0 : i32
    %c0_i32_0 = arith.constant 0 : i32
    %c0_i32_1 = arith.constant 0 : i32
    return %c0_i32, %c0_i32_0 : i32, i32
  }
  func.func @transform_7(%arg0: i32, %arg1: i32) -> (i32, i32) {
    %c0_i32 = arith.constant 0 : i32
    %c0_i32_0 = arith.constant 0 : i32
    %c0_i32_1 = arith.constant 0 : i32
    return %c0_i32, %c0_i32_0 : i32, i32
  }
  func.func @transform_8(%arg0: i32, %arg1: i32) -> (i32, i32) {
    %c0_i32 = arith.constant 0 : i32
    %c0_i32_0 = arith.constant 0 : i32
    %c0_i32_1 = arith.constant 0 : i32
    return %c0_i32, %c0_i32_0 : i32, i32
  }
  func.func @transform_9(%arg0: i32, %arg1: i32) -> (i32, i32) {
    %c0_i32 = arith.constant 0 : i32
    %c0_i32_0 = arith.constant 0 : i32
    %c0_i32_1 = arith.constant 0 : i32
    return %c0_i32, %c0_i32_0 : i32, i32
  }
  func.func @transform_10(%arg0: i32, %arg1: i32) -> (i32, i32, i32) {
    %c0_i32 = arith.constant 0 : i32
    %c0_i32_0 = arith.constant 0 : i32
    %c0_i32_1 = arith.constant 0 : i32
    return %arg0, %c0_i32, %c0_i32_0 : i32, i32, i32
  }
  func.func @transform_11(%arg0: i32, %arg1: i32) -> (i32, i32, i32) {
    %c0_i32 = arith.constant 0 : i32
    %c0_i32_0 = arith.constant 0 : i32
    return %arg0, %arg1, %c0_i32 : i32, i32, i32
  }
}

module attributes {stable_mosaic.version = 11 : i64} {
  func.func @irl_abmil_kernel(%arg0: i32, %arg1: i32, %arg2: memref<1x8x32xf32, #tpu.memory_space<vmem>>, %arg3: memref<32x32xf32, #tpu.memory_space<vmem>>, %arg4: memref<1x32xf32, #tpu.memory_space<vmem>>, %arg5: memref<1x32xf32, #tpu.memory_space<vmem>>, %arg6: memref<1x32xf32, #tpu.memory_space<vmem>>, %arg7: memref<32x384xf32, #tpu.memory_space<vmem>>, %arg8: memref<1x384xf32, #tpu.memory_space<vmem>>, %arg9: memref<1x128xf32, #tpu.memory_space<vmem>>, %arg10: memref<1x1xf32, #tpu.memory_space<smem>>, %arg11: memref<1x128xf32, #tpu.memory_space<vmem>>, %arg12: memref<1x1x128xf32, #tpu.memory_space<vmem>>, %arg13: memref<1x8x128xf32, #tpu.memory_space<vmem>>, %arg14: memref<1x1xf32, #tpu.memory_space<vmem>>, %arg15: memref<1x1xf32, #tpu.memory_space<vmem>>, %arg16: memref<1x128xf32, #tpu.memory_space<vmem>>) attributes {dimension_semantics = [#tpu.dimension_semantics<parallel>, #tpu.dimension_semantics<arbitrary>], iteration_bounds = array<i64: 2, 2>, scalar_prefetch = 0 : i64, scratch_operands = 3 : i64, tpu.core_type = #tpu.core_type<tc>, window_params = [{transform_indices = @transform_0, window_bounds = array<i64: 1, 8, 32>}, {pipeline_mode = #tpu.pipeline_mode<synchronous>, transform_indices = @transform_1, window_bounds = array<i64: 32, 32>}, {pipeline_mode = #tpu.pipeline_mode<synchronous>, transform_indices = @transform_2, window_bounds = array<i64: 1, 32>}, {pipeline_mode = #tpu.pipeline_mode<synchronous>, transform_indices = @transform_3, window_bounds = array<i64: 1, 32>}, {pipeline_mode = #tpu.pipeline_mode<synchronous>, transform_indices = @transform_4, window_bounds = array<i64: 1, 32>}, {pipeline_mode = #tpu.pipeline_mode<synchronous>, transform_indices = @transform_5, window_bounds = array<i64: 32, 384>}, {pipeline_mode = #tpu.pipeline_mode<synchronous>, transform_indices = @transform_6, window_bounds = array<i64: 1, 384>}, {pipeline_mode = #tpu.pipeline_mode<synchronous>, transform_indices = @transform_7, window_bounds = array<i64: 1, 128>}, {transform_indices = @transform_8, window_bounds = array<i64: 1, 1>}, {pipeline_mode = #tpu.pipeline_mode<synchronous>, transform_indices = @transform_9, window_bounds = array<i64: 1, 128>}, {transform_indices = @transform_10, window_bounds = array<i64: 1, 1, 128>}, {transform_indices = @transform_11, window_bounds = array<i64: 1, 8, 128>}]} {
    %c0_i32 = arith.constant 0 : i32
    %0 = arith.cmpi eq, %arg1, %c0_i32 : i32
    %1 = arith.extui %0 : i1 to i32
    %c0_i32_0 = arith.constant 0 : i32
    %2 = arith.cmpi ne, %1, %c0_i32_0 : i32
    scf.if %2 {
      %cst_48 = arith.constant 0xFF800000 : f32
      %85 = vector.broadcast %cst_48 : f32 to vector<1x1xf32>
      %c0_49 = arith.constant 0 : index
      %c0_50 = arith.constant 0 : index
      %86 = vector.load %arg14[%c0_49, %c0_50] : memref<1x1xf32, #tpu.memory_space<vmem>>, vector<1x1xf32>
      tpu.vector_store %arg14[%c0_49, %c0_50], %85 {strides = array<i32>} : memref<1x1xf32, #tpu.memory_space<vmem>>, vector<1x1xf32>,
      %cst_51 = arith.constant 0.000000e+00 : f32
      %87 = vector.broadcast %cst_51 : f32 to vector<1x1xf32>
      %c0_52 = arith.constant 0 : index
      %c0_53 = arith.constant 0 : index
      %88 = vector.load %arg15[%c0_52, %c0_53] : memref<1x1xf32, #tpu.memory_space<vmem>>, vector<1x1xf32>
      tpu.vector_store %arg15[%c0_52, %c0_53], %87 {strides = array<i32>} : memref<1x1xf32, #tpu.memory_space<vmem>>, vector<1x1xf32>,
      %cst_54 = arith.constant 0.000000e+00 : f32
      %89 = vector.broadcast %cst_54 : f32 to vector<1x128xf32>
      %c0_55 = arith.constant 0 : index
      %c0_56 = arith.constant 0 : index
      %90 = vector.load %arg16[%c0_55, %c0_56] : memref<1x128xf32, #tpu.memory_space<vmem>>, vector<1x128xf32>
      tpu.vector_store %arg16[%c0_55, %c0_56], %89 {strides = array<i32>} : memref<1x128xf32, #tpu.memory_space<vmem>>, vector<1x128xf32>,
    } else {
    }
    %c0 = arith.constant 0 : index
    %c0_1 = arith.constant 0 : index
    %c0_2 = arith.constant 0 : index
    %3 = vector.load %arg2[%c0, %c0_1, %c0_2] : memref<1x8x32xf32, #tpu.memory_space<vmem>>, vector<1x8x32xf32>
    %4 = vector.shape_cast %3 : vector<1x8x32xf32> to vector<8x32xf32>
    %c0_3 = arith.constant 0 : index
    %c0_4 = arith.constant 0 : index
    %5 = vector.load %arg3[%c0_3, %c0_4] : memref<32x32xf32, #tpu.memory_space<vmem>>, vector<32x32xf32>
    %cst = arith.constant dense<0.000000e+00> : vector<8x32xf32>
    %6 = tpu.matmul %4, %5, %cst {dimension_numbers = #tpu.dot_dimension_numbers<[1], [0], [0], [1], [0, 0, 1, 1], [], []>} : vector<8x32xf32>, vector<32x32xf32>, vector<8x32xf32> -> vector<8x32xf32>
    %c0_5 = arith.constant 0 : index
    %c0_6 = arith.constant 0 : index
    %7 = vector.load %arg4[%c0_5, %c0_6] : memref<1x32xf32, #tpu.memory_space<vmem>>, vector<1x32xf32>
    %8 = vector.broadcast %7 : vector<1x32xf32> to vector<8x32xf32>
    %9 = arith.addf %6, %8 : vector<8x32xf32>
    %cst_7 = arith.constant dense<0.000000e+00> : vector<8xf32>
    %10 = vector.multi_reduction <add>, %9, %cst_7 [1] : vector<8x32xf32> to vector<8xf32>
    %11 = vector.shape_cast %10 : vector<8xf32> to vector<8x1xf32>
    %cst_8 = arith.constant 3.200000e+01 : f32
    %12 = vector.broadcast %cst_8 : f32 to vector<8x1xf32>
    %13 = arith.divf %11, %12 : vector<8x1xf32>
    %14 = arith.mulf %9, %9 : vector<8x32xf32>
    %cst_9 = arith.constant dense<0.000000e+00> : vector<8xf32>
    %15 = vector.multi_reduction <add>, %14, %cst_9 [1] : vector<8x32xf32> to vector<8xf32>
    %16 = vector.shape_cast %15 : vector<8xf32> to vector<8x1xf32>
    %cst_10 = arith.constant 3.200000e+01 : f32
    %17 = vector.broadcast %cst_10 : f32 to vector<8x1xf32>
    %18 = arith.divf %16, %17 : vector<8x1xf32>
    %19 = arith.mulf %13, %13 : vector<8x1xf32>
    %20 = arith.subf %18, %19 : vector<8x1xf32>
    %cst_11 = arith.constant 0.000000e+00 : f32
    %21 = vector.broadcast %cst_11 : f32 to vector<8x1xf32>
    %22 = arith.maximumf %20, %21 : vector<8x1xf32>
    %23 = vector.broadcast %13 : vector<8x1xf32> to vector<8x32xf32>
    %24 = arith.subf %9, %23 : vector<8x32xf32>
    %cst_12 = arith.constant 9.99999974E-6 : f32
    %25 = vector.broadcast %cst_12 : f32 to vector<8x1xf32>
    %26 = arith.addf %22, %25 : vector<8x1xf32>
    %27 = math.rsqrt %26 : vector<8x1xf32>
    %28 = vector.broadcast %27 : vector<8x1xf32> to vector<8x32xf32>
    %29 = arith.mulf %24, %28 : vector<8x32xf32>
    %c0_13 = arith.constant 0 : index
    %c0_14 = arith.constant 0 : index
    %30 = vector.load %arg5[%c0_13, %c0_14] : memref<1x32xf32, #tpu.memory_space<vmem>>, vector<1x32xf32>
    %31 = vector.broadcast %30 : vector<1x32xf32> to vector<8x32xf32>
    %32 = arith.mulf %29, %31 : vector<8x32xf32>
    %c0_15 = arith.constant 0 : index
    %c0_16 = arith.constant 0 : index
    %33 = vector.load %arg6[%c0_15, %c0_16] : memref<1x32xf32, #tpu.memory_space<vmem>>, vector<1x32xf32>
    %34 = vector.broadcast %33 : vector<1x32xf32> to vector<8x32xf32>
    %35 = arith.addf %32, %34 : vector<8x32xf32>
    %c0_17 = arith.constant 0 : index
    %c0_18 = arith.constant 0 : index
    %36 = vector.load %arg7[%c0_17, %c0_18] : memref<32x384xf32, #tpu.memory_space<vmem>>, vector<32x384xf32>
    %cst_19 = arith.constant dense<0.000000e+00> : vector<8x384xf32>
    %37 = tpu.matmul %35, %36, %cst_19 {dimension_numbers = #tpu.dot_dimension_numbers<[1], [0], [0], [1], [0, 0, 1, 1], [], []>} : vector<8x32xf32>, vector<32x384xf32>, vector<8x384xf32> -> vector<8x384xf32>
    %c0_20 = arith.constant 0 : index
    %c0_21 = arith.constant 0 : index
    %38 = vector.load %arg8[%c0_20, %c0_21] : memref<1x384xf32, #tpu.memory_space<vmem>>, vector<1x384xf32>
    %39 = vector.broadcast %38 : vector<1x384xf32> to vector<8x384xf32>
    %40 = arith.addf %37, %39 : vector<8x384xf32>
    %41 = vector.extract_strided_slice %40 {offsets = [0, 0], sizes = [8, 128], strides = [1, 1]} : vector<8x384xf32> to vector<8x128xf32>
    %42 = vector.extract_strided_slice %40 {offsets = [0, 128], sizes = [8, 128], strides = [1, 1]} : vector<8x384xf32> to vector<8x128xf32>
    %43 = math.tanh %42 : vector<8x128xf32>
    %44 = vector.extract_strided_slice %40 {offsets = [0, 256], sizes = [8, 128], strides = [1, 1]} : vector<8x384xf32> to vector<8x128xf32>
    %c0_22 = arith.constant 0 : index
    %c0_23 = arith.constant 0 : index
    %c0_24 = arith.constant 0 : index
    %45 = vector.load %arg13[%c0_22, %c0_23, %c0_24] : memref<1x8x128xf32, #tpu.memory_space<vmem>>, vector<1x8x128xf32>
    %46 = vector.shape_cast %45 : vector<1x8x128xf32> to vector<8x128xf32>
    %47 = vector.shape_cast %41 : vector<8x128xf32> to vector<1x8x128xf32>
    tpu.vector_store %arg13[%c0_22, %c0_23, %c0_24], %47 {strides = array<i32>} : memref<1x8x128xf32, #tpu.memory_space<vmem>>, vector<1x8x128xf32>,
    %c0_25 = arith.constant 0 : index
    %c0_26 = arith.constant 0 : index
    %48 = vector.load %arg9[%c0_25, %c0_26] : memref<1x128xf32, #tpu.memory_space<vmem>>, vector<1x128xf32>
    %49 = vector.broadcast %48 : vector<1x128xf32> to vector<8x128xf32>
    %50 = arith.mulf %43, %49 : vector<8x128xf32>
    %cst_27 = arith.constant dense<0.000000e+00> : vector<8xf32>
    %51 = vector.multi_reduction <add>, %50, %cst_27 [1] : vector<8x128xf32> to vector<8xf32>
    %52 = vector.shape_cast %51 : vector<8xf32> to vector<8x1xf32>
    %c0_28 = arith.constant 0 : index
    %c0_29 = arith.constant 0 : index
    %53 = memref.load %arg10[%c0_28, %c0_29] : memref<1x1xf32, #tpu.memory_space<smem>>
    %54 = vector.broadcast %53 : f32 to vector<8x1xf32>
    %55 = arith.addf %52, %54 : vector<8x1xf32>
    %cst_30 = arith.constant dense<0xFF800000> : vector<1xf32>
    %56 = vector.multi_reduction <maximumf>, %55, %cst_30 [0] : vector<8x1xf32> to vector<1xf32>
    %57 = vector.shape_cast %56 : vector<1xf32> to vector<1x1xf32>
    %c0_31 = arith.constant 0 : index
    %c0_32 = arith.constant 0 : index
    %58 = vector.load %arg14[%c0_31, %c0_32] : memref<1x1xf32, #tpu.memory_space<vmem>>, vector<1x1xf32>
    %59 = arith.maximumf %58, %57 : vector<1x1xf32>
    %c0_33 = arith.constant 0 : index
    %c0_34 = arith.constant 0 : index
    %60 = vector.load %arg14[%c0_33, %c0_34] : memref<1x1xf32, #tpu.memory_space<vmem>>, vector<1x1xf32>
    %61 = arith.subf %60, %59 : vector<1x1xf32>
    %62 = math.exp %61 : vector<1x1xf32>
    %63 = vector.broadcast %59 : vector<1x1xf32> to vector<8x1xf32>
    %64 = arith.subf %55, %63 : vector<8x1xf32>
    %65 = math.exp %64 : vector<8x1xf32>
    %c0_35 = arith.constant 0 : index
    %c0_36 = arith.constant 0 : index
    %66 = vector.load %arg15[%c0_35, %c0_36] : memref<1x1xf32, #tpu.memory_space<vmem>>, vector<1x1xf32>
    %67 = arith.mulf %62, %66 : vector<1x1xf32>
    %cst_37 = arith.constant dense<0.000000e+00> : vector<1xf32>
    %68 = vector.multi_reduction <add>, %65, %cst_37 [0] : vector<8x1xf32> to vector<1xf32>
    %69 = vector.shape_cast %68 : vector<1xf32> to vector<1x1xf32>
    %70 = arith.addf %67, %69 : vector<1x1xf32>
    %c0_38 = arith.constant 0 : index
    %c0_39 = arith.constant 0 : index
    %71 = vector.load %arg15[%c0_38, %c0_39] : memref<1x1xf32, #tpu.memory_space<vmem>>, vector<1x1xf32>
    tpu.vector_store %arg15[%c0_38, %c0_39], %70 {strides = array<i32>} : memref<1x1xf32, #tpu.memory_space<vmem>>, vector<1x1xf32>,
    %c0_40 = arith.constant 0 : index
    %c0_41 = arith.constant 0 : index
    %72 = vector.load %arg16[%c0_40, %c0_41] : memref<1x128xf32, #tpu.memory_space<vmem>>, vector<1x128xf32>
    %73 = vector.broadcast %62 : vector<1x1xf32> to vector<1x128xf32>
    %74 = arith.mulf %73, %72 : vector<1x128xf32>
    %75 = vector.broadcast %65 : vector<8x1xf32> to vector<8x128xf32>
    %76 = arith.mulf %75, %44 : vector<8x128xf32>
    %cst_42 = arith.constant dense<0.000000e+00> : vector<128xf32>
    %77 = vector.multi_reduction <add>, %76, %cst_42 [0] : vector<8x128xf32> to vector<128xf32>
    %78 = vector.shape_cast %77 : vector<128xf32> to vector<1x128xf32>
    %79 = arith.addf %74, %78 : vector<1x128xf32>
    %c0_43 = arith.constant 0 : index
    %c0_44 = arith.constant 0 : index
    %80 = vector.load %arg16[%c0_43, %c0_44] : memref<1x128xf32, #tpu.memory_space<vmem>>, vector<1x128xf32>
    tpu.vector_store %arg16[%c0_43, %c0_44], %79 {strides = array<i32>} : memref<1x128xf32, #tpu.memory_space<vmem>>, vector<1x128xf32>,
    %c0_45 = arith.constant 0 : index
    %c0_46 = arith.constant 0 : index
    %81 = vector.load %arg14[%c0_45, %c0_46] : memref<1x1xf32, #tpu.memory_space<vmem>>, vector<1x1xf32>
    tpu.vector_store %arg14[%c0_45, %c0_46], %59 {strides = array<i32>} : memref<1x1xf32, #tpu.memory_space<vmem>>, vector<1x1xf32>,
    %c1_i32 = arith.constant 1 : i32
    %82 = arith.cmpi eq, %arg1, %c1_i32 : i32
    %83 = arith.extui %82 : i1 to i32
    %c0_i32_47 = arith.constant 0 : i32
    %84 = arith.cmpi ne, %83, %c0_i32_47 : i32
    scf.if %84 {
      %c0_48 = arith.constant 0 : index
      %c0_49 = arith.constant 0 : index
      %85 = vector.load %arg15[%c0_48, %c0_49] : memref<1x1xf32, #tpu.memory_space<vmem>>, vector<1x1xf32>
      %86 = tpu.reciprocal %85 {approx = true} : vector<1x1xf32> -> vector<1x1xf32>
      %87 = arith.mulf %85, %86 : vector<1x1xf32>
      %cst_50 = arith.constant 2.000000e+00 : f32
      %88 = vector.broadcast %cst_50 : f32 to vector<1x1xf32>
      %89 = arith.subf %88, %87 : vector<1x1xf32>
      %90 = arith.mulf %86, %89 : vector<1x1xf32>
      %c0_51 = arith.constant 0 : index
      %c0_52 = arith.constant 0 : index
      %91 = vector.load %arg16[%c0_51, %c0_52] : memref<1x128xf32, #tpu.memory_space<vmem>>, vector<1x128xf32>
      %92 = vector.broadcast %90 : vector<1x1xf32> to vector<1x128xf32>
      %93 = arith.mulf %91, %92 : vector<1x128xf32>
      %c0_53 = arith.constant 0 : index
      %c0_54 = arith.constant 0 : index
      %94 = vector.load %arg11[%c0_53, %c0_54] : memref<1x128xf32, #tpu.memory_space<vmem>>, vector<1x128xf32>
      %95 = arith.addf %93, %94 : vector<1x128xf32>
      %c0_55 = arith.constant 0 : index
      %c0_56 = arith.constant 0 : index
      %c0_57 = arith.constant 0 : index
      %96 = vector.load %arg12[%c0_55, %c0_56, %c0_57] : memref<1x1x128xf32, #tpu.memory_space<vmem>>, vector<1x1x128xf32>
      %97 = vector.shape_cast %96 : vector<1x1x128xf32> to vector<1x128xf32>
      %98 = vector.shape_cast %95 : vector<1x128xf32> to vector<1x1x128xf32>
      tpu.vector_store %arg12[%c0_55, %c0_56, %c0_57], %98 {strides = array<i32>} : memref<1x1x128xf32, #tpu.memory_space<vmem>>, vector<1x1x128xf32>,
    } else {
    }
    return
  }
  func.func @transform_0(%arg0: i32, %arg1: i32) -> (i32, i32, i32) {
    %c0_i32 = arith.constant 0 : i32
    %c0_i32_0 = arith.constant 0 : i32
    return %arg0, %arg1, %c0_i32 : i32, i32, i32
  }
  func.func @transform_1(%arg0: i32, %arg1: i32) -> (i32, i32) {
    %c0_i32 = arith.constant 0 : i32
    %c0_i32_0 = arith.constant 0 : i32
    %c0_i32_1 = arith.constant 0 : i32
    return %c0_i32, %c0_i32_0 : i32, i32
  }
  func.func @transform_2(%arg0: i32, %arg1: i32) -> (i32, i32) {
    %c0_i32 = arith.constant 0 : i32
    %c0_i32_0 = arith.constant 0 : i32
    %c0_i32_1 = arith.constant 0 : i32
    return %c0_i32, %c0_i32_0 : i32, i32
  }
  func.func @transform_3(%arg0: i32, %arg1: i32) -> (i32, i32) {
    %c0_i32 = arith.constant 0 : i32
    %c0_i32_0 = arith.constant 0 : i32
    %c0_i32_1 = arith.constant 0 : i32
    return %c0_i32, %c0_i32_0 : i32, i32
  }
  func.func @transform_4(%arg0: i32, %arg1: i32) -> (i32, i32) {
    %c0_i32 = arith.constant 0 : i32
    %c0_i32_0 = arith.constant 0 : i32
    %c0_i32_1 = arith.constant 0 : i32
    return %c0_i32, %c0_i32_0 : i32, i32
  }
  func.func @transform_5(%arg0: i32, %arg1: i32) -> (i32, i32) {
    %c0_i32 = arith.constant 0 : i32
    %c0_i32_0 = arith.constant 0 : i32
    %c0_i32_1 = arith.constant 0 : i32
    return %c0_i32, %c0_i32_0 : i32, i32
  }
  func.func @transform_6(%arg0: i32, %arg1: i32) -> (i32, i32) {
    %c0_i32 = arith.constant 0 : i32
    %c0_i32_0 = arith.constant 0 : i32
    %c0_i32_1 = arith.constant 0 : i32
    return %c0_i32, %c0_i32_0 : i32, i32
  }
  func.func @transform_7(%arg0: i32, %arg1: i32) -> (i32, i32) {
    %c0_i32 = arith.constant 0 : i32
    %c0_i32_0 = arith.constant 0 : i32
    %c0_i32_1 = arith.constant 0 : i32
    return %c0_i32, %c0_i32_0 : i32, i32
  }
  func.func @transform_8(%arg0: i32, %arg1: i32) -> (i32, i32) {
    %c0_i32 = arith.constant 0 : i32
    %c0_i32_0 = arith.constant 0 : i32
    %c0_i32_1 = arith.constant 0 : i32
    return %c0_i32, %c0_i32_0 : i32, i32
  }
  func.func @transform_9(%arg0: i32, %arg1: i32) -> (i32, i32) {
    %c0_i32 = arith.constant 0 : i32
    %c0_i32_0 = arith.constant 0 : i32
    %c0_i32_1 = arith.constant 0 : i32
    return %c0_i32, %c0_i32_0 : i32, i32
  }
  func.func @transform_10(%arg0: i32, %arg1: i32) -> (i32, i32, i32) {
    %c0_i32 = arith.constant 0 : i32
    %c0_i32_0 = arith.constant 0 : i32
    %c0_i32_1 = arith.constant 0 : i32
    return %arg0, %c0_i32, %c0_i32_0 : i32, i32, i32
  }
  func.func @transform_11(%arg0: i32, %arg1: i32) -> (i32, i32, i32) {
    %c0_i32 = arith.constant 0 : i32
    %c0_i32_0 = arith.constant 0 : i32
    return %arg0, %arg1, %c0_i32 : i32, i32, i32
  }
}

</mosaic_0001>

<llo_original>
// kernel: tpu_custom_call.1
$region0: #{tpu_custom_call.1}
  #allocation0 [shape = 'u32[]', space=smem, size = 0x4, offset = 0x4, fixed_abs, tag = 'smem constant byte address 0x4 - core index']
  #allocation1 [shape = 'u32[144,128]{1,0:T(1,128)}', space=vmem, size = 0x12000, scoped, tag = 'internal scratch']
  #allocation2 [shape = 'f32[1,1]{1,0:T(1,128)}', space=vmem, size = 0x200, scoped, tag = 'scratch operand']
  #allocation3 [shape = 'f32[1,1]{1,0:T(1,128)}', space=vmem, size = 0x200, scoped, tag = 'scratch operand']
  #allocation4 [shape = 'f32[1,128]{1,0:T(1,128)}', space=vmem, size = 0x200, scoped, tag = 'scratch operand']
  #allocation5 [shape = 'f32[1,1]{1,0:T(1,128)S(6)}', space=smem, size = 0x200, scoped, tag = 'scoped memory for tpu_custom_call.1']
  %s0 = inlined_call_operand.hbm [shape: f32[2,16,32], index: 0, kind: input, shape index: {}]
  %s1 = inlined_call_operand.hbm [shape: f32[32,32], index: 1, kind: input, shape index: {}]
  %s2 = inlined_call_operand.hbm [shape: f32[1,32], index: 2, kind: input, shape index: {}]
  %s3 = inlined_call_operand.hbm [shape: f32[1,32], index: 3, kind: input, shape index: {}]
  %s4 = inlined_call_operand.hbm [shape: f32[1,32], index: 4, kind: input, shape index: {}]
  %s5 = inlined_call_operand.hbm [shape: f32[32,384], index: 5, kind: input, shape index: {}]
  %s6 = inlined_call_operand.hbm [shape: f32[1,384], index: 6, kind: input, shape index: {}]
  %s7 = inlined_call_operand.hbm [shape: f32[1,128], index: 7, kind: input, shape index: {}]
  %s8 = inlined_call_operand.<no memory space> [shape: f32[1,1], index: 8, kind: input, shape index: {}]
  %s9 = inlined_call_operand.hbm [shape: f32[1,128], index: 9, kind: input, shape index: {}]
  %s10 = inlined_call_operand.hbm [shape: f32[2,1,128], index: 10, kind: output, shape index: {0}]
  %s11 = inlined_call_operand.hbm [shape: f32[2,16,128], index: 11, kind: output, shape index: {1}]
  %12 = xla_tuple %s10, %s11
  %s13 = sld [smem:[#allocation0]]
  $region125: #{tpu_custom_call.1} parent=0
    _
  %s15 = ssub.s32 1, %s13
  %s16 = scalar_select 0, %s15, %s13
  %17 = sst [smem:[#allocation5]] %s8
  $region1: #{tpu_custom_call.1} parent=0
    #allocation6 [shape = 'u8[8192]{0}', space=vmem, size = 0x2000, scoped, tag = 'input window, operand 0']
    #allocation7 [shape = 's32[2]{0}', space=sflag, size = 0x8, scoped, tag = 'scoped memory for tpu_custom_call.1']
    #allocation8 [shape = 's32[2]{0}', space=sflag, size = 0x8, scoped, tag = 'scoped memory for tpu_custom_call.1']
    #allocation9 [shape = 'u8[16384]{0}', space=vmem, size = 0x4000, scoped, tag = 'input window, operand 1, single buffered']
    #allocation10 [shape = 's32[1]{0}', space=sflag, size = 0x4, scoped, tag = 'scoped memory for tpu_custom_call.1']
    #allocation11 [shape = 'u8[512]{0}', space=vmem, size = 0x400, scoped, tag = 'input window, operand 2, single buffered']
    #allocation12 [shape = 'u8[512]{0}', space=vmem, size = 0x400, scoped, tag = 'input window, operand 3, single buffered']
    #allocation13 [shape = 's32[1]{0}', space=sflag, size = 0x4, scoped, tag = 'scoped memory for tpu_custom_call.1']
    #allocation14 [shape = 'u8[512]{0}', space=vmem, size = 0x400, scoped, tag = 'input window, operand 4, single buffered']
    #allocation15 [shape = 'u8[49152]{0}', space=vmem, size = 0xc000, scoped, tag = 'input window, operand 5, single buffered']
    #allocation16 [shape = 's32[1]{0}', space=sflag, size = 0x4, scoped, tag = 'scoped memory for tpu_custom_call.1']
    #allocation17 [shape = 'u8[1536]{0}', space=vmem, size = 0x800, scoped, tag = 'input window, operand 6, single buffered']
    #allocation18 [shape = 'u8[512]{0}', space=vmem, size = 0x400, scoped, tag = 'input window, operand 7, single buffered']
    #allocation19 [shape = 's32[1]{0}', space=sflag, size = 0x4, scoped, tag = 'scoped memory for tpu_custom_call.1']
    #allocation20 [shape = 'u8[512]{0}', space=vmem, size = 0x400, scoped, tag = 'input window, operand 9, single buffered']
    #allocation21 [shape = 'u8[1024]{0}', space=vmem, size = 0x400, scoped, tag = 'output window, operand 0']
    #allocation22 [shape = 'u8[8192]{0}', space=vmem, size = 0x2000, scoped, tag = 'output window, operand 1']
    #allocation23 [shape = 's32[2]{0}', space=sflag, size = 0x8, scoped, tag = 'scoped memory for tpu_custom_call.1']
    %18 = vsyncpa [#allocation7], 0
    %s19 = scalar_lea.sflag [#allocation7], 1
    %20 = vsyncpa %s19, 0
    %21 = vsyncpa [#allocation10], 0
    %22 = vsyncpa [#allocation13], 0
    %23 = vsyncpa [#allocation16], 0
    %24 = vsyncpa [#allocation19], 0
    %25 = vsyncpa [#allocation8], 0
    %s26 = scalar_lea.sflag [#allocation8], 1
    %27 = vsyncpa %s26, 0
    %28 = vsyncpa [#allocation23], 0
    %s29 = scalar_lea.sflag [#allocation23], 1
    %30 = vsyncpa %s29, 0
    loop: start=0, step=1, limit=6
    $region2: #{tpu_custom_call.1} parent=1 // loop_pre_header
      _
    $region3: #{tpu_custom_call.1} parent=1 // loop_header
      %s32 = sphi 0, %s36
      %p33 = scmp.ge.s32.totalorder %s32, 6
      %s39 = sphi 0, %s51
      %s40 = sphi 0, %s47
      %s41 = sphi 0, %s39
      %s42 = sphi 0, %s40
      %s43 = sphi 0, %s41
      %s44 = sphi 0, %s42
      %s56 = sphi 0, %s58
      %s59 = sphi 0, %s56
      %s60 = sphi 0, %s59
      %s76 = sphi 0, %s60
      %s80 = sphi 0, %s80
      %s82 = sphi 0, %s80
      %s83 = sphi 0, %s82
      %s97 = sphi 0, %s83
      %s101 = sphi 0, %s101
      %s103 = sphi 0, %s101
      %s104 = sphi 0, %s103
      %s118 = sphi 0, %s104
      %s122 = sphi 0, %s122
      %s124 = sphi 0, %s122
      %s125 = sphi 0, %s124
      %s139 = sphi 0, %s125
      %s143 = sphi 0, %s143
      %s145 = sphi 0, %s143
      %s146 = sphi 0, %s145
      %s160 = sphi 0, %s146
      %s164 = sphi 0, %s164
      %s166 = sphi 0, %s164
      %s167 = sphi 0, %s166
      %s181 = sphi 0, %s167
      %s185 = sphi 0, %s185
      %s187 = sphi 0, %s185
      %s188 = sphi 0, %s187
      %s202 = sphi 0, %s188
      %s206 = sphi 0, %s206
      %s208 = sphi 0, %s206
      %s209 = sphi 0, %s208
      %s223 = sphi 0, %s209
      %s227 = sphi 0, %s227
      %s229 = sphi 0, %s227
      %s230 = sphi 0, %s229
      %s244 = sphi 0, %s230
      %s248 = sphi 0, %s248
      %s250 = sphi 0, %s248
      %s251 = sphi 0, %s250
      %s265 = sphi 0, %s251
      %s271 = sphi 0, %s273
      %s274 = sphi 0, %s271
      %s275 = sphi 0, %s274
      %s291 = sphi 0, %s275
      %s299 = sphi 0, %s301
      %s302 = sphi 0, %s299
      %s303 = sphi 0, %s302
      %s319 = sphi 0, %s303
    $region4: #{tpu_custom_call.1} parent=1 // loop_header_branch
      %35 = sbr.rel (%p33) target = $region8
    $region5: #{tpu_custom_call.1} parent=1 // loop_body
      %s37 = ssub.s32 %s32, 1
      %s38 = ssub.s32 %s32, 2
      %s45 = sadd.s32 1, %s40
      %p46 = scmp.ge.s32.totalorder %s45, 2
      %s47 = scalar_select %p46, 0, %s45
      %s48 = sadd.s32 1, %s39
      %s49 = scalar_select %p46, %s48, %s39
      %p50 = scmp.ge.s32.totalorder %s49, 2
      %s51 = scalar_select %p50, 0, %s49
      %s52 = ssub.s32 %s39, %s51
      %s53 = ssub.s32 %s40, %s47
      %s54 = sor.u32 %s52, %s53
      %p55 = scmp.eq.s32.totalorder %s54, 0
      %s57 = sadd.s32 %s56, 1
      %s58 = scalar_select %p55, %s56, %s57
      %p61 = pneg %p55
      %p62 = scmp.eq.s32.totalorder %s32, 3
      %p63 = por %p61, %p62
      %p64 = scmp.ne.s32.totalorder %s56, %s59
      %p65 = scmp.eq.s32.totalorder %s32, 0
      %p66 = por %p64, %p65
      %p67 = scmp.ne.s32.totalorder %s56, %s59
      %p68 = scmp.eq.s32.totalorder %s37, 3
      %p69 = por %p67, %p68
      %p70 = scmp.ne.s32.totalorder %s59, %s60
      %p71 = scmp.eq.s32.totalorder %s37, 0
      %p72 = por %p70, %p71
      %p73 = scmp.ne.s32.totalorder %s59, %s60
      %p74 = scmp.eq.s32.totalorder %s38, 3
      %p75 = por %p73, %p74
      %p77 = scmp.ne.s32.totalorder %s60, %s76
      %p78 = scmp.eq.s32.totalorder %s38, 0
      %p79 = por %p77, %p78
      %s81 = sadd.s32 %s80, 1
      %p84 = scmp.eq.s32.totalorder %s32, 3
      %p85 = scmp.ne.s32.totalorder %s80, %s82
      %p86 = scmp.eq.s32.totalorder %s32, 0
      %p87 = por %p85, %p86
      %p88 = scmp.ne.s32.totalorder %s80, %s82
      %p89 = scmp.eq.s32.totalorder %s37, 3
      %p90 = por %p88, %p89
      %p91 = scmp.ne.s32.totalorder %s82, %s83
      %p92 = scmp.eq.s32.totalorder %s37, 0
      %p93 = por %p91, %p92
      %p94 = scmp.ne.s32.totalorder %s82, %s83
      %p95 = scmp.eq.s32.totalorder %s38, 3
      %p96 = por %p94, %p95
      %p98 = scmp.ne.s32.totalorder %s83, %s97
      %p99 = scmp.eq.s32.totalorder %s38, 0
      %p100 = por %p98, %p99
      %s102 = sadd.s32 %s101, 1
      %p105 = scmp.eq.s32.totalorder %s32, 3
      %p106 = scmp.ne.s32.totalorder %s101, %s103
      %p107 = scmp.eq.s32.totalorder %s32, 0
      %p108 = por %p106, %p107
      %p109 = scmp.ne.s32.totalorder %s101, %s103
      %p110 = scmp.eq.s32.totalorder %s37, 3
      %p111 = por %p109, %p110
      %p112 = scmp.ne.s32.totalorder %s103, %s104
      %p113 = scmp.eq.s32.totalorder %s37, 0
      %p114 = por %p112, %p113
      %p115 = scmp.ne.s32.totalorder %s103, %s104
      %p116 = scmp.eq.s32.totalorder %s38, 3
      %p117 = por %p115, %p116
      %p119 = scmp.ne.s32.totalorder %s104, %s118
      %p120 = scmp.eq.s32.totalorder %s38, 0
      %p121 = por %p119, %p120
      %s123 = sadd.s32 %s122, 1
      %p126 = scmp.eq.s32.totalorder %s32, 3
      %p127 = scmp.ne.s32.totalorder %s122, %s124
      %p128 = scmp.eq.s32.totalorder %s32, 0
      %p129 = por %p127, %p128
      %p130 = scmp.ne.s32.totalorder %s122, %s124
      %p131 = scmp.eq.s32.totalorder %s37, 3
      %p132 = por %p130, %p131
      %p133 = scmp.ne.s32.totalorder %s124, %s125
      %p134 = scmp.eq.s32.totalorder %s37, 0
      %p135 = por %p133, %p134
      %p136 = scmp.ne.s32.totalorder %s124, %s125
      %p137 = scmp.eq.s32.totalorder %s38, 3
      %p138 = por %p136, %p137
      %p140 = scmp.ne.s32.totalorder %s125, %s139
      %p141 = scmp.eq.s32.totalorder %s38, 0
      %p142 = por %p140, %p141
      %s144 = sadd.s32 %s143, 1
      %p147 = scmp.eq.s32.totalorder %s32, 3
      %p148 = scmp.ne.s32.totalorder %s143, %s145
      %p149 = scmp.eq.s32.totalorder %s32, 0
      %p150 = por %p148, %p149
      %p151 = scmp.ne.s32.totalorder %s143, %s145
      %p152 = scmp.eq.s32.totalorder %s37, 3
      %p153 = por %p151, %p152
      %p154 = scmp.ne.s32.totalorder %s145, %s146
      %p155 = scmp.eq.s32.totalorder %s37, 0
      %p156 = por %p154, %p155
      %p157 = scmp.ne.s32.totalorder %s145, %s146
      %p158 = scmp.eq.s32.totalorder %s38, 3
      %p159 = por %p157, %p158
      %p161 = scmp.ne.s32.totalorder %s146, %s160
      %p162 = scmp.eq.s32.totalorder %s38, 0
      %p163 = por %p161, %p162
      %s165 = sadd.s32 %s164, 1
      %p168 = scmp.eq.s32.totalorder %s32, 3
      %p169 = scmp.ne.s32.totalorder %s164, %s166
      %p170 = scmp.eq.s32.totalorder %s32, 0
      %p171 = por %p169, %p170
      %p172 = scmp.ne.s32.totalorder %s164, %s166
      %p173 = scmp.eq.s32.totalorder %s37, 3
      %p174 = por %p172, %p173
      %p175 = scmp.ne.s32.totalorder %s166, %s167
      %p176 = scmp.eq.s32.totalorder %s37, 0
      %p177 = por %p175, %p176
      %p178 = scmp.ne.s32.totalorder %s166, %s167
      %p179 = scmp.eq.s32.totalorder %s38, 3
      %p180 = por %p178, %p179
      %p182 = scmp.ne.s32.totalorder %s167, %s181
      %p183 = scmp.eq.s32.totalorder %s38, 0
      %p184 = por %p182, %p183
      %s186 = sadd.s32 %s185, 1
      %p189 = scmp.eq.s32.totalorder %s32, 3
      %p190 = scmp.ne.s32.totalorder %s185, %s187
      %p191 = scmp.eq.s32.totalorder %s32, 0
      %p192 = por %p190, %p191
      %p193 = scmp.ne.s32.totalorder %s185, %s187
      %p194 = scmp.eq.s32.totalorder %s37, 3
      %p195 = por %p193, %p194
      %p196 = scmp.ne.s32.totalorder %s187, %s188
      %p197 = scmp.eq.s32.totalorder %s37, 0
      %p198 = por %p196, %p197
      %p199 = scmp.ne.s32.totalorder %s187, %s188
      %p200 = scmp.eq.s32.totalorder %s38, 3
      %p201 = por %p199, %p200
      %p203 = scmp.ne.s32.totalorder %s188, %s202
      %p204 = scmp.eq.s32.totalorder %s38, 0
      %p205 = por %p203, %p204
      %s207 = sadd.s32 %s206, 1
      %p210 = scmp.eq.s32.totalorder %s32, 3
      %p211 = scmp.ne.s32.totalorder %s206, %s208
      %p212 = scmp.eq.s32.totalorder %s32, 0
      %p213 = por %p211, %p212
      %p214 = scmp.ne.s32.totalorder %s206, %s208
      %p215 = scmp.eq.s32.totalorder %s37, 3
      %p216 = por %p214, %p215
      %p217 = scmp.ne.s32.totalorder %s208, %s209
      %p218 = scmp.eq.s32.totalorder %s37, 0
      %p219 = por %p217, %p218
      %p220 = scmp.ne.s32.totalorder %s208, %s209
      %p221 = scmp.eq.s32.totalorder %s38, 3
      %p222 = por %p220, %p221
      %p224 = scmp.ne.s32.totalorder %s209, %s223
      %p225 = scmp.eq.s32.totalorder %s38, 0
      %p226 = por %p224, %p225
      %s228 = sadd.s32 %s227, 1
      %p231 = scmp.eq.s32.totalorder %s32, 3
      %p232 = scmp.ne.s32.totalorder %s227, %s229
      %p233 = scmp.eq.s32.totalorder %s32, 0
      %p234 = por %p232, %p233
      %p235 = scmp.ne.s32.totalorder %s227, %s229
      %p236 = scmp.eq.s32.totalorder %s37, 3
      %p237 = por %p235, %p236
      %p238 = scmp.ne.s32.totalorder %s229, %s230
      %p239 = scmp.eq.s32.totalorder %s37, 0
      %p240 = por %p238, %p239
      %p241 = scmp.ne.s32.totalorder %s229, %s230
      %p242 = scmp.eq.s32.totalorder %s38, 3
      %p243 = por %p241, %p242
      %p245 = scmp.ne.s32.totalorder %s230, %s244
      %p246 = scmp.eq.s32.totalorder %s38, 0
      %p247 = por %p245, %p246
      %s249 = sadd.s32 %s248, 1
      %p252 = scmp.eq.s32.totalorder %s32, 3
      %p253 = scmp.ne.s32.totalorder %s248, %s250
      %p254 = scmp.eq.s32.totalorder %s32, 0
      %p255 = por %p253, %p254
      %p256 = scmp.ne.s32.totalorder %s248, %s250
      %p257 = scmp.eq.s32.totalorder %s37, 3
      %p258 = por %p256, %p257
      %p259 = scmp.ne.s32.totalorder %s250, %s251
      %p260 = scmp.eq.s32.totalorder %s37, 0
      %p261 = por %p259, %p260
      %p262 = scmp.ne.s32.totalorder %s250, %s251
      %p263 = scmp.eq.s32.totalorder %s38, 3
      %p264 = por %p262, %p263
      %p266 = scmp.ne.s32.totalorder %s251, %s265
      %p267 = scmp.eq.s32.totalorder %s38, 0
      %p268 = por %p266, %p267
      %s269 = ssub.s32 %s39, %s51
      %p270 = scmp.eq.s32.totalorder %s269, 0
      %s272 = sadd.s32 %s271, 1
      %s273 = scalar_select %p270, %s271, %s272
      %p276 = pneg %p270
      %p277 = scmp.eq.s32.totalorder %s32, 3
      %p278 = por %p276, %p277
      %p279 = scmp.ne.s32.totalorder %s271, %s274
      %p280 = scmp.eq.s32.totalorder %s32, 0
      %p281 = por %p279, %p280
      %p282 = scmp.ne.s32.totalorder %s271, %s274
      %p283 = scmp.eq.s32.totalorder %s37, 3
      %p284 = por %p282, %p283
      %p285 = scmp.ne.s32.totalorder %s274, %s275
      %p286 = scmp.eq.s32.totalorder %s37, 0
      %p287 = por %p285, %p286
      %p288 = scmp.ne.s32.totalorder %s274, %s275
      %p289 = scmp.eq.s32.totalorder %s38, 3
      %p290 = por %p288, %p289
      %p292 = scmp.ne.s32.totalorder %s275, %s291
      %p293 = scmp.eq.s32.totalorder %s38, 0
      %p294 = por %p292, %p293
      %s295 = ssub.s32 %s39, %s51
      %s296 = ssub.s32 %s40, %s47
      %s297 = sor.u32 %s295, %s296
      %p298 = scmp.eq.s32.totalorder %s297, 0
      %s300 = sadd.s32 %s299, 1
      %s301 = scalar_select %p298, %s299, %s300
      %p304 = pneg %p298
      %p305 = scmp.eq.s32.totalorder %s32, 3
      %p306 = por %p304, %p305
      %p307 = scmp.ne.s32.totalorder %s299, %s302
      %p308 = scmp.eq.s32.totalorder %s32, 0
      %p309 = por %p307, %p308
      %p310 = scmp.ne.s32.totalorder %s299, %s302
      %p311 = scmp.eq.s32.totalorder %s37, 3
      %p312 = por %p310, %p311
      %p313 = scmp.ne.s32.totalorder %s302, %s303
      %p314 = scmp.eq.s32.totalorder %s37, 0
      %p315 = por %p313, %p314
      %p316 = scmp.ne.s32.totalorder %s302, %s303
      %p317 = scmp.eq.s32.totalorder %s38, 3
      %p318 = por %p316, %p317
      %p320 = scmp.ne.s32.totalorder %s303, %s319
      %p321 = scmp.eq.s32.totalorder %s38, 0
      %p322 = por %p320, %p321
      %p323 = scmp.le.s32.totalorder 1, %s32
      %p324 = scmp.lt.s32.totalorder %s32, 5
      %p325 = pnand %p323, %p324
      %p326 = pneg %p325
      // Predicated region
      $region9: #{tpu_custom_call.1} parent=5 // pred_check
        _
      $region10: #{tpu_custom_call.1} parent=5 // pred_check_branch
        %328 = sbr.rel (%p325) target = $region12
      $region11: #{tpu_custom_call.1} parent=5 // pred_region
        %s329 = ssub.s32 %s32, 1
        // Predicated region
        $region13: #{tpu_custom_call.1} parent=11 // pred_check
          %p330 = pneg %p93
        $region14: #{tpu_custom_call.1} parent=11 // pred_check_branch
          %332 = sbr.rel (%p330) target = $region16
        $region15: #{tpu_custom_call.1} parent=11 // pred_region
          %s334 = ssub.s32 512, 512
          %335 = vsyncadd [#allocation10], %s334
          %s336 = sshll.u32 [#allocation9], 4
          %s337 = int_to_ptr.vmem [resolvable:$true] %s336
          %342 = dma.hbm_to_vmem [thread:$0]  %s1, 512, %s337, [#allocation10], 128, 128, 8
        $region16: #{tpu_custom_call.1} parent=11 // pred_fallthru
          _
        // Predicated region
        $region17: #{tpu_custom_call.1} parent=11 // pred_check
          %p343 = pneg %p114
        $region18: #{tpu_custom_call.1} parent=11 // pred_check_branch
          %345 = sbr.rel (%p343) target = $region20
        $region19: #{tpu_custom_call.1} parent=11 // pred_region
          %s347 = ssub.s32 16, 16
          %348 = vsyncadd [#allocation10], %s347
          %s350 = sshll.u32 [#allocation11], 4
          %s351 = int_to_ptr.vmem [resolvable:$true] %s350
          %353 = dma.hbm_to_vmem [thread:$0]  %s2, 16, %s351, [#allocation10]
        $region20: #{tpu_custom_call.1} parent=11 // pred_fallthru
          _
        // Predicated region
        $region21: #{tpu_custom_call.1} parent=11 // pred_check
          %p354 = pneg %p135
        $region22: #{tpu_custom_call.1} parent=11 // pred_check_branch
          %356 = sbr.rel (%p354) target = $region24
        $region23: #{tpu_custom_call.1} parent=11 // pred_region
          %s358 = ssub.s32 16, 16
          %359 = vsyncadd [#allocation13], %s358
          %s361 = sshll.u32 [#allocation12], 4
          %s362 = int_to_ptr.vmem [resolvable:$true] %s361
          %364 = dma.hbm_to_vmem [thread:$0]  %s3, 16, %s362, [#allocation13]
        $region24: #{tpu_custom_call.1} parent=11 // pred_fallthru
          _
        // Predicated region
        $region25: #{tpu_custom_call.1} parent=11 // pred_check
          %p365 = pneg %p156
        $region26: #{tpu_custom_call.1} parent=11 // pred_check_branch
          %367 = sbr.rel (%p365) target = $region28
        $region27: #{tpu_custom_call.1} parent=11 // pred_region
          %s369 = ssub.s32 16, 16
          %370 = vsyncadd [#allocation13], %s369
          %s372 = sshll.u32 [#allocation14], 4
          %s373 = int_to_ptr.vmem [resolvable:$true] %s372
          %375 = dma.hbm_to_vmem [thread:$0]  %s4, 16, %s373, [#allocation13]
        $region28: #{tpu_custom_call.1} parent=11 // pred_fallthru
          _
        // Predicated region
        $region29: #{tpu_custom_call.1} parent=11 // pred_check
          %p376 = pneg %p177
        $region30: #{tpu_custom_call.1} parent=11 // pred_check_branch
          %378 = sbr.rel (%p376) target = $region32
        $region31: #{tpu_custom_call.1} parent=11 // pred_region
          %s380 = ssub.s32 1536, 1536
          %381 = vsyncadd [#allocation16], %s380
          %s382 = sshll.u32 [#allocation15], 4
          %s383 = int_to_ptr.vmem [resolvable:$true] %s382
          %388 = dma.hbm_to_vmem [thread:$0]  %s5, 1536, %s383, [#allocation16], 384, 384, 24
        $region32: #{tpu_custom_call.1} parent=11 // pred_fallthru
          _
        // Predicated region
        $region33: #{tpu_custom_call.1} parent=11 // pred_check
          %p389 = pneg %p198
        $region34: #{tpu_custom_call.1} parent=11 // pred_check_branch
          %391 = sbr.rel (%p389) target = $region36
        $region35: #{tpu_custom_call.1} parent=11 // pred_region
          %s393 = ssub.s32 48, 48
          %394 = vsyncadd [#allocation16], %s393
          %s396 = sshll.u32 [#allocation17], 4
          %s397 = int_to_ptr.vmem [resolvable:$true] %s396
          %399 = dma.hbm_to_vmem [thread:$0]  %s6, 48, %s397, [#allocation16]
        $region36: #{tpu_custom_call.1} parent=11 // pred_fallthru
          _
        // Predicated region
        $region37: #{tpu_custom_call.1} parent=11 // pred_check
          %p400 = pneg %p219
        $region38: #{tpu_custom_call.1} parent=11 // pred_check_branch
          %402 = sbr.rel (%p400) target = $region40
        $region39: #{tpu_custom_call.1} parent=11 // pred_region
          %s404 = ssub.s32 16, 16
          %405 = vsyncadd [#allocation19], %s404
          %s407 = sshll.u32 [#allocation18], 4
          %s408 = int_to_ptr.vmem [resolvable:$true] %s407
          %410 = dma.hbm_to_vmem [thread:$0]  %s7, 16, %s408, [#allocation19]
        $region40: #{tpu_custom_call.1} parent=11 // pred_fallthru
          _
        // Predicated region
        $region41: #{tpu_custom_call.1} parent=11 // pred_check
          %p411 = pneg %p240
        $region42: #{tpu_custom_call.1} parent=11 // pred_check_branch
          %413 = sbr.rel (%p411) target = $region44
        $region43: #{tpu_custom_call.1} parent=11 // pred_region
          _
        $region44: #{tpu_custom_call.1} parent=11 // pred_fallthru
          _
        // Predicated region
        $region45: #{tpu_custom_call.1} parent=11 // pred_check
          %p414 = pneg %p261
        $region46: #{tpu_custom_call.1} parent=11 // pred_check_branch
          %416 = sbr.rel (%p414) target = $region48
        $region47: #{tpu_custom_call.1} parent=11 // pred_region
          %s418 = ssub.s32 16, 16
          %419 = vsyncadd [#allocation19], %s418
          %s421 = sshll.u32 [#allocation20], 4
          %s422 = int_to_ptr.vmem [resolvable:$true] %s421
          %424 = dma.hbm_to_vmem [thread:$0]  %s9, 16, %s422, [#allocation19]
        $region48: #{tpu_custom_call.1} parent=11 // pred_fallthru
          _
      $region12: #{tpu_custom_call.1} parent=5 // pred_fallthru
        _
      %p425 = scmp.lt.s32.totalorder %s32, 4
      // Predicated region
      $region49: #{tpu_custom_call.1} parent=5 // pred_check
        %p426 = pneg %p425
      $region50: #{tpu_custom_call.1} parent=5 // pred_check_branch
        %428 = sbr.rel (%p426) target = $region52
      $region51: #{tpu_custom_call.1} parent=5 // pred_region
        // Predicated region
        $region53: #{tpu_custom_call.1} parent=51 // pred_check
          %p429 = pneg %p66
        $region54: #{tpu_custom_call.1} parent=51 // pred_check_branch
          %431 = sbr.rel (%p429) target = $region56
        $region55: #{tpu_custom_call.1} parent=51 // pred_region
          %s432 = sand.u32 %s56, 1
          %s433 = scalar_lea.sflag [#allocation7], %s432
          %s434 = sand.u32 %s56, 1
          %s435 = smul.addr %s434, 8
          %s436 = scalar_lea.vmem [#allocation6], %s435
          %s438 = ssub.s32 128, 128
          %439 = vsyncadd %s433, %s438
          %s440 = smul.addr %s39, 2
          %s441 = sadd.s32 %s40, %s440
          %s442 = smul.addr %s441, 128
          %s443 = scalar_lea.hbm %s0, %s442
          %s445 = sshll.u32 %s436, 4
          %s446 = int_to_ptr.vmem [resolvable:$true] %s445
          %448 = dma.hbm_to_vmem [thread:$0]  %s443, 128, %s446, %s433
        $region56: #{tpu_custom_call.1} parent=51 // pred_fallthru
          _
      $region52: #{tpu_custom_call.1} parent=5 // pred_fallthru
        _
      %p449 = scmp.le.s32.totalorder 1, %s32
      %p450 = scmp.lt.s32.totalorder %s32, 5
      %p451 = pnand %p449, %p450
      %p452 = pneg %p451
      // Predicated region
      $region57: #{tpu_custom_call.1} parent=5 // pred_check
        _
      $region58: #{tpu_custom_call.1} parent=5 // pred_check_branch
        %454 = sbr.rel (%p451) target = $region60
      $region59: #{tpu_custom_call.1} parent=5 // pred_region
        %s455 = ssub.s32 %s32, 1
        %s456 = sand.u32 %s59, 1
        %s457 = scalar_lea.sflag [#allocation7], %s456
        %s458 = sand.u32 %s59, 1
        %s459 = smul.addr %s458, 8
        %s460 = scalar_lea.vmem [#allocation6], %s459
        // Predicated region
        $region61: #{tpu_custom_call.1} parent=59 // pred_check
          %p461 = pneg %p72
        $region62: #{tpu_custom_call.1} parent=59 // pred_check_branch
          %463 = sbr.rel (%p461) target = $region64
        $region63: #{tpu_custom_call.1} parent=59 // pred_region
          %464 = dma.done %s457, 128
        $region64: #{tpu_custom_call.1} parent=59 // pred_fallthru
          _
        // Predicated region
        $region65: #{tpu_custom_call.1} parent=59 // pred_check
          %p465 = pneg %p93
        $region66: #{tpu_custom_call.1} parent=59 // pred_check_branch
          %467 = sbr.rel (%p465) target = $region68
        $region67: #{tpu_custom_call.1} parent=59 // pred_region
          %468 = dma.done [#allocation10], 512
        $region68: #{tpu_custom_call.1} parent=59 // pred_fallthru
          _
        // Predicated region
        $region69: #{tpu_custom_call.1} parent=59 // pred_check
          %p469 = pneg %p114
        $region70: #{tpu_custom_call.1} parent=59 // pred_check_branch
          %471 = sbr.rel (%p469) target = $region72
        $region71: #{tpu_custom_call.1} parent=59 // pred_region
          %472 = dma.done [#allocation10], 16
        $region72: #{tpu_custom_call.1} parent=59 // pred_fallthru
          _
        // Predicated region
        $region73: #{tpu_custom_call.1} parent=59 // pred_check
          %p473 = pneg %p135
        $region74: #{tpu_custom_call.1} parent=59 // pred_check_branch
          %475 = sbr.rel (%p473) target = $region76
        $region75: #{tpu_custom_call.1} parent=59 // pred_region
          %476 = dma.done [#allocation13], 16
        $region76: #{tpu_custom_call.1} parent=59 // pred_fallthru
          _
        // Predicated region
        $region77: #{tpu_custom_call.1} parent=59 // pred_check
          %p477 = pneg %p156
        $region78: #{tpu_custom_call.1} parent=59 // pred_check_branch
          %479 = sbr.rel (%p477) target = $region80
        $region79: #{tpu_custom_call.1} parent=59 // pred_region
          %480 = dma.done [#allocation13], 16
        $region80: #{tpu_custom_call.1} parent=59 // pred_fallthru
          _
        // Predicated region
        $region81: #{tpu_custom_call.1} parent=59 // pred_check
          %p481 = pneg %p177
        $region82: #{tpu_custom_call.1} parent=59 // pred_check_branch
          %483 = sbr.rel (%p481) target = $region84
        $region83: #{tpu_custom_call.1} parent=59 // pred_region
          %484 = dma.done [#allocation16], 1536
        $region84: #{tpu_custom_call.1} parent=59 // pred_fallthru
          _
        // Predicated region
        $region85: #{tpu_custom_call.1} parent=59 // pred_check
          %p485 = pneg %p198
        $region86: #{tpu_custom_call.1} parent=59 // pred_check_branch
          %487 = sbr.rel (%p485) target = $region88
        $region87: #{tpu_custom_call.1} parent=59 // pred_region
          %488 = dma.done [#allocation16], 48
        $region88: #{tpu_custom_call.1} parent=59 // pred_fallthru
          _
        // Predicated region
        $region89: #{tpu_custom_call.1} parent=59 // pred_check
          %p489 = pneg %p219
        $region90: #{tpu_custom_call.1} parent=59 // pred_check_branch
          %491 = sbr.rel (%p489) target = $region92
        $region91: #{tpu_custom_call.1} parent=59 // pred_region
          %492 = dma.done [#allocation19], 16
        $region92: #{tpu_custom_call.1} parent=59 // pred_fallthru
          _
        // Predicated region
        $region93: #{tpu_custom_call.1} parent=59 // pred_check
          %p493 = pneg %p261
        $region94: #{tpu_custom_call.1} parent=59 // pred_check_branch
          %495 = sbr.rel (%p493) target = $region96
        $region95: #{tpu_custom_call.1} parent=59 // pred_region
          %496 = dma.done [#allocation19], 16
        $region96: #{tpu_custom_call.1} parent=59 // pred_fallthru
          _
        %s497 = sand.u32 %s59, 1
        %s498 = scalar_lea.sflag [#allocation7], %s497
        %s499 = sand.u32 %s59, 1
        %s500 = smul.addr %s499, 8
        %s501 = scalar_lea.vmem [#allocation6], %s500
        %p502 = pneg %p72
        %p503 = pneg %p69
        %p504 = pneg %p93
        %p505 = pneg %p90
        %p506 = pneg %p114
        %p507 = pneg %p111
        %p508 = pneg %p135
        %p509 = pneg %p132
        %p510 = pneg %p156
        %p511 = pneg %p153
        %p512 = pneg %p177
        %p513 = pneg %p174
        %p514 = pneg %p198
        %p515 = pneg %p195
        %p516 = pneg %p219
        %p517 = pneg %p216
        %p518 = pneg %p240
        %p519 = pneg %p237
        %p520 = pneg %p261
        %p521 = pneg %p258
        %p522 = pneg %p287
        %p523 = pneg %p284
        %s524 = sand.u32 %s274, 1
        %s525 = scalar_lea.sflag [#allocation8], %s524
        %s526 = sand.u32 %s274, 1
        %s527 = scalar_lea.vmem [#allocation21], %s526
        %p528 = pneg %p315
        %p529 = pneg %p312
        %s530 = sand.u32 %s302, 1
        %s531 = scalar_lea.sflag [#allocation23], %s530
        %s532 = sand.u32 %s302, 1
        %s533 = smul.addr %s532, 8
        %s534 = scalar_lea.vmem [#allocation22], %s533
        %p535 = scmp.eq.s32.totalorder %s42, 0
        // Predicated region
        $region97: #{tpu_custom_call.1} parent=59 // pred_check
          %p536 = pneg %p535
        $region98: #{tpu_custom_call.1} parent=59 // pred_check_branch
          %538 = sbr.rel (%p536) target = $region100
        $region99: #{tpu_custom_call.1} parent=59 // pred_region
          %vm539 = vcmask 0
          %540 = vst.msk [vmem:[#allocation2] sm:$0x1] %vm539, -inf
          %541 = vst.msk [vmem:[#allocation3] sm:$0x1] %vm539, 0.0
          %542 = vst [vmem:[#allocation4] sm:$0x1] 0.0
        $region100: #{tpu_custom_call.1} parent=59 // pred_fallthru
          _
        %v543 = vld [vmem:[%s460] sm:$0xff]
        %v544 = vld [vmem:[#allocation9] sm:$0xff]
        %v545 = vld [vmem:[#allocation9 + $0x8] sm:$0xff]
        %v546 = vld [vmem:[#allocation9 + $0x10] sm:$0xff]
        %v547 = vld [vmem:[#allocation9 + $0x18] sm:$0xff]
        %v548 = vld [vmem:[#allocation11] sm:$0x1]
        %v550 = vlaneseq
        %v551 = vshrl.u32 %v550, 7
        %v552 = vsub.s32 0, %v551
        %v553 = vrot.slane %v548, %v552
        %vm555 = vcmask 261120
        %v557 = vsel %vm555, %v543, 0
        %559 = vmatprep.subr.mxu0 0.0
        %560 = vmatpush1.msra.mxu0 %v544
        %561 = vmatprep.subr.mxu0 0.0
        %562 = vmatpush1.msra.mxu0 %v545
        %563 = vmatprep.subr.mxu0 0.0
        %564 = vmatpush1.msra.mxu0 %v546
        %565 = vmatprep.subr.mxu0 0.0
        %566 = vmatpush1.msra.mxu0 %v547
        %567 = vmatprep.subr.mxu0 0.0
        %568 = vmatpush1.msra.mxu0 0.0
        %569 = vmatprep.subr.mxu0 0.0
        %570 = vmatpush1.msra.mxu0 0.0
        %571 = vmatprep.subr.mxu0 0.0
        %572 = vmatpush1.msra.mxu0 0.0
        %573 = vmatprep.subr.mxu0 0.0
        %574 = vmatpush1.msra.mxu0 0.0
        %575 = vmatprep.subr.mxu0 0.0
        %576 = vmatpush1.msra.mxu0 0.0
        %577 = vmatprep.subr.mxu0 0.0
        %578 = vmatpush1.msra.mxu0 0.0
        %579 = vmatprep.subr.mxu0 0.0
        %580 = vmatpush1.msra.mxu0 0.0
        %581 = vmatprep.subr.mxu0 0.0
        %582 = vmatpush1.msra.mxu0 0.0
        %583 = vmatprep.subr.mxu0 0.0
        %584 = vmatpush1.msra.mxu0 0.0
        %585 = vmatprep.subr.mxu0 0.0
        %586 = vmatpush1.msra.mxu0 0.0
        %587 = vmatprep.subr.mxu0 0.0
        %588 = vmatpush1.msra.mxu0 0.0
        %589 = vmatprep.subr.mxu0 0.0
        %590 = vmatpush1.msra.mxu0 0.0
        %591 = vmatprep.subr.mxu0 0.0
        %592 = vmatpush1.msra.mxu0 0.0
        %593 = vmatprep.subr.mxu0 0.0
        %594 = vmatpush1.msra.mxu0 0.0
        %595 = vmatprep.subr.mxu0 0.0
        %596 = vmatpush1.msra.mxu0 0.0
        %597 = vmatprep.subr.mxu0 0.0
        %598 = vmatpush1.msra.mxu0 0.0
        %599 = vmatprep.subr.mxu0 0.0
        %600 = vmatpush1.msra.mxu0 0.0
        %601 = vmatprep.subr.mxu0 0.0
        %602 = vmatpush1.msra.mxu0 0.0
        %603 = vmatprep.subr.mxu0 0.0
        %604 = vmatpush1.msra.mxu0 0.0
        %605 = vmatprep.subr.mxu0 0.0
        %606 = vmatpush1.msra.mxu0 0.0
        %607 = vmatprep.subr.mxu0 0.0
        %608 = vmatpush1.msra.mxu0 0.0
        %609 = vmatprep.subr.mxu0 0.0
        %610 = vmatpush1.msra.mxu0 0.0
        %611 = vmatprep.subr.mxu0 0.0
        %612 = vmatpush1.msra.mxu0 0.0
        %613 = vmatprep.subr.mxu0 0.0
        %614 = vmatpush1.msra.mxu0 0.0
        %615 = vmatprep.subr.mxu0 0.0
        %616 = vmatpush1.msra.mxu0 0.0
        %617 = vmatprep.subr.mxu0 0.0
        %618 = vmatpush1.msra.mxu0 0.0
        %619 = vmatprep.subr.mxu0 0.0
        %620 = vmatpush1.msra.mxu0 0.0
        %621 = vmatprep.subr.mxu0 0.0
        %622 = vmatpush1.msra.mxu0 0.0
        %623 = vmatprep.mubr.f32.mxu0 0.0
        %624 = vmatmul.mubr.f32.gmra.mrb[0].mxu0 %v557
        %v625 = vpop.f32.mrb[0].mxu0
        %v626 = vadd.f32 %v553, %v625
        %v627 = vpop.f32.mrb[0].mxu0
        %628 = vdwg.mxu0
        %v629 = vsel %vm555, %v626, 0.0
        %630 = vadd.xlane.f32.xlu0 %v629
        %v631 = vpop.xlane.xlu0 %630
        %v632 = vrcp.pop 32.0
        %v633 = vmul.f32 %v631, %v632
        %v634 = vmul.f32 %v626, %v626
        %v635 = vsel %vm555, %v634, 0.0
        %636 = vadd.xlane.f32.xlu0 %v635
        %v637 = vpop.xlane.xlu0 %636
        %v638 = vmul.f32 %v637, %v632
        %v639 = vmul.f32 %v633, %v633
        %v640 = vsub.f32 %v638, %v639
        %v641 = vmax.f32 %v640, 0.0
        %v642 = vsub.f32 %v626, %v633
        %v643 = vadd.f32 %v641, 1e-05
        %v644 = vrsqrt.pop %v643
        %v645 = vmul.f32 %v642, %v644
        %v646 = vld [vmem:[#allocation12] sm:$0x1]
        %v648 = vlaneseq
        %v649 = vshrl.u32 %v648, 7
        %v650 = vsub.s32 0, %v649
        %v651 = vrot.slane %v646, %v650
        %v653 = vmul.f32 %v645, %v651
        %v654 = vld [vmem:[#allocation14] sm:$0x1]
        %v656 = vlaneseq
        %v657 = vshrl.u32 %v656, 7
        %v658 = vsub.s32 0, %v657
        %v659 = vrot.slane %v654, %v658
        %v661 = vadd.f32 %v653, %v659
        %v662 = vld [vmem:[#allocation15] sm:$0xff]
        %v663 = vld [vmem:[#allocation15 + $0x8] sm:$0xff]
        %v664 = vld [vmem:[#allocation15 + $0x10] sm:$0xff]
        %v665 = vld [vmem:[#allocation15 + $0x18] sm:$0xff]
        %v666 = vld [vmem:[#allocation15 + $0x20] sm:$0xff]
        %v667 = vld [vmem:[#allocation15 + $0x28] sm:$0xff]
        %v668 = vld [vmem:[#allocation15 + $0x30] sm:$0xff]
        %v669 = vld [vmem:[#allocation15 + $0x38] sm:$0xff]
        %v670 = vld [vmem:[#allocation15 + $0x40] sm:$0xff]
        %v671 = vld [vmem:[#allocation15 + $0x48] sm:$0xff]
        %v672 = vld [vmem:[#allocation15 + $0x50] sm:$0xff]
        %v673 = vld [vmem:[#allocation15 + $0x58] sm:$0xff]
        %v674 = vld [vmem:[#allocation17] sm:$0x7]
        %v676 = vlaneseq
        %v677 = vshrl.u32 %v676, 7
        %v678 = vsub.s32 0, %v677
        %v679 = vrot.slane %v674, %v678
        %v680 = vlaneseq
        %v681 = vshrl.u32 %v680, 7
        %v682 = vsub.s32 1, %v681
        %v683 = vrot.slane %v674, %v682
        %v684 = vlaneseq
        %v685 = vshrl.u32 %v684, 7
        %v686 = vsub.s32 2, %v685
        %v687 = vrot.slane %v674, %v686
        %v692 = vsel %vm555, %v661, 0
        %694 = vmatprep.subr.mxu0 %v663
        %695 = vmatpush1.msra.mxu0 %v662
        %696 = vmatprep.subr.mxu0 %v666
        %697 = vmatpush1.msra.mxu0 %v665
        %698 = vmatprep.subr.mxu0 %v669
        %699 = vmatpush1.msra.mxu0 %v668
        %700 = vmatprep.subr.mxu0 %v672
        %701 = vmatpush1.msra.mxu0 %v671
        %702 = vmatprep.subr.mxu0 0.0
        %703 = vmatpush1.msra.mxu0 0.0
        %704 = vmatprep.subr.mxu0 0.0
        %705 = vmatpush1.msra.mxu0 0.0
        %706 = vmatprep.subr.mxu0 0.0
        %707 = vmatpush1.msra.mxu0 0.0
        %708 = vmatprep.subr.mxu0 0.0
        %709 = vmatpush1.msra.mxu0 0.0
        %710 = vmatprep.subr.mxu0 0.0
        %711 = vmatpush1.msra.mxu0 0.0
        %712 = vmatprep.subr.mxu0 0.0
        %713 = vmatpush1.msra.mxu0 0.0
        %714 = vmatprep.subr.mxu0 0.0
        %715 = vmatpush1.msra.mxu0 0.0
        %716 = vmatprep.subr.mxu0 0.0
        %717 = vmatpush1.msra.mxu0 0.0
        %718 = vmatprep.subr.mxu0 0.0
        %719 = vmatpush1.msra.mxu0 0.0
        %720 = vmatprep.subr.mxu0 0.0
        %721 = vmatpush1.msra.mxu0 0.0
        %722 = vmatprep.subr.mxu0 0.0
        %723 = vmatpush1.msra.mxu0 0.0
        %724 = vmatprep.subr.mxu0 0.0
        %725 = vmatpush1.msra.mxu0 0.0
        %726 = vmatprep.subr.mxu0 0.0
        %727 = vmatpush1.msra.mxu0 0.0
        %728 = vmatprep.subr.mxu0 0.0
        %729 = vmatpush1.msra.mxu0 0.0
        %730 = vmatprep.subr.mxu0 0.0
        %731 = vmatpush1.msra.mxu0 0.0
        %732 = vmatprep.subr.mxu0 0.0
        %733 = vmatpush1.msra.mxu0 0.0
        %734 = vmatprep.subr.mxu0 0.0
        %735 = vmatpush1.msra.mxu0 0.0
        %736 = vmatprep.subr.mxu0 0.0
        %737 = vmatpush1.msra.mxu0 0.0
        %738 = vmatprep.subr.mxu0 0.0
        %739 = vmatpush1.msra.mxu0 0.0
        %740 = vmatprep.subr.mxu0 0.0
        %741 = vmatpush1.msra.mxu0 0.0
        %742 = vmatprep.subr.mxu0 0.0
        %743 = vmatpush1.msra.mxu0 0.0
        %744 = vmatprep.subr.mxu0 0.0
        %745 = vmatpush1.msra.mxu0 0.0
        %746 = vmatprep.subr.mxu0 0.0
        %747 = vmatpush1.msra.mxu0 0.0
        %748 = vmatprep.subr.mxu0 0.0
        %749 = vmatpush1.msra.mxu0 0.0
        %750 = vmatprep.subr.mxu0 0.0
        %751 = vmatpush1.msra.mxu0 0.0
        %752 = vmatprep.subr.mxu0 0.0
        %753 = vmatpush1.msra.mxu0 0.0
        %754 = vmatprep.subr.mxu0 0.0
        %755 = vmatpush1.msra.mxu0 0.0
        %756 = vmatprep.subr.mxu0 0.0
        %757 = vmatpush1.msra.mxu0 0.0
        %758 = vmatprep.mubr.f32.mxu0 0.0
        %759 = vmatmul.mubr.f32.gmra.mrb[0].mxu0 %v692
        %v760 = vpop.f32.mrb[0].mxu0
        %v761 = vadd.f32 %v679, %v760
        %v762 = vpop.f32.mrb[0].mxu0
        %v763 = vadd.f32 %v683, %v762
        %764 = vdwg.mxu0
        %765 = vmatprep.subr.mxu0 0.0
        %766 = vmatpush1.msra.mxu0 %v664
        %767 = vmatprep.subr.mxu0 0.0
        %768 = vmatpush1.msra.mxu0 %v667
        %769 = vmatprep.subr.mxu0 0.0
        %770 = vmatpush1.msra.mxu0 %v670
        %771 = vmatprep.subr.mxu0 0.0
        %772 = vmatpush1.msra.mxu0 %v673
        %773 = vmatprep.subr.mxu0 0.0
        %774 = vmatpush1.msra.mxu0 0.0
        %775 = vmatprep.subr.mxu0 0.0
        %776 = vmatpush1.msra.mxu0 0.0
        %777 = vmatprep.subr.mxu0 0.0
        %778 = vmatpush1.msra.mxu0 0.0
        %779 = vmatprep.subr.mxu0 0.0
        %780 = vmatpush1.msra.mxu0 0.0
        %781 = vmatprep.subr.mxu0 0.0
        %782 = vmatpush1.msra.mxu0 0.0
        %783 = vmatprep.subr.mxu0 0.0
        %784 = vmatpush1.msra.mxu0 0.0
        %785 = vmatprep.subr.mxu0 0.0
        %786 = vmatpush1.msra.mxu0 0.0
        %787 = vmatprep.subr.mxu0 0.0
        %788 = vmatpush1.msra.mxu0 0.0
        %789 = vmatprep.subr.mxu0 0.0
        %790 = vmatpush1.msra.mxu0 0.0
        %791 = vmatprep.subr.mxu0 0.0
        %792 = vmatpush1.msra.mxu0 0.0
        %793 = vmatprep.subr.mxu0 0.0
        %794 = vmatpush1.msra.mxu0 0.0
        %795 = vmatprep.subr.mxu0 0.0
        %796 = vmatpush1.msra.mxu0 0.0
        %797 = vmatprep.subr.mxu0 0.0
        %798 = vmatpush1.msra.mxu0 0.0
        %799 = vmatprep.subr.mxu0 0.0
        %800 = vmatpush1.msra.mxu0 0.0
        %801 = vmatprep.subr.mxu0 0.0
        %802 = vmatpush1.msra.mxu0 0.0
        %803 = vmatprep.subr.mxu0 0.0
        %804 = vmatpush1.msra.mxu0 0.0
        %805 = vmatprep.subr.mxu0 0.0
        %806 = vmatpush1.msra.mxu0 0.0
        %807 = vmatprep.subr.mxu0 0.0
        %808 = vmatpush1.msra.mxu0 0.0
        %809 = vmatprep.subr.mxu0 0.0
        %810 = vmatpush1.msra.mxu0 0.0
        %811 = vmatprep.subr.mxu0 0.0
        %812 = vmatpush1.msra.mxu0 0.0
        %813 = vmatprep.subr.mxu0 0.0
        %814 = vmatpush1.msra.mxu0 0.0
        %815 = vmatprep.subr.mxu0 0.0
        %816 = vmatpush1.msra.mxu0 0.0
        %817 = vmatprep.subr.mxu0 0.0
        %818 = vmatpush1.msra.mxu0 0.0
        %819 = vmatprep.subr.mxu0 0.0
        %820 = vmatpush1.msra.mxu0 0.0
        %821 = vmatprep.subr.mxu0 0.0
        %822 = vmatpush1.msra.mxu0 0.0
        %823 = vmatprep.subr.mxu0 0.0
        %824 = vmatpush1.msra.mxu0 0.0
        %825 = vmatprep.subr.mxu0 0.0
        %826 = vmatpush1.msra.mxu0 0.0
        %827 = vmatprep.subr.mxu0 0.0
        %828 = vmatpush1.msra.mxu0 0.0
        %829 = vmatprep.mubr.f32.mxu0 0.0
        %830 = vmatmul.mubr.f32.gmra.mrb[0].mxu0 %v692
        %v831 = vpop.f32.mrb[0].mxu0
        %v832 = vadd.f32 %v687, %v831
        %v833 = vpop.f32.mrb[0].mxu0
        %834 = vdwg.mxu0
        %v835 = vtanh.pop %v763
        %836 = vst [vmem:[%s534] sm:$0xff] %v761
        %v837 = vld [vmem:[#allocation18] sm:$0x1]
        %v839 = vlaneseq
        %v840 = vshrl.u32 %v839, 7
        %v841 = vsub.s32 0, %v840
        %v842 = vrot.slane %v837, %v841
        %v844 = vmul.f32 %v835, %v842
        %845 = vadd.xlane.f32.xlu0 %v844
        %v846 = vpop.xlane.xlu0 %845
        %s847 = sld [smem:[#allocation5]]
        %v848 = vstv %s847
        %v849 = vadd.f32 %v846, %v848
        %v850 = vrot.slane %v849, 4
        %v851 = vmax.f32 %v849, %v850
        %v852 = vrot.slane %v851, 2
        %v853 = vmax.f32 %v851, %v852
        %v854 = vrot.slane %v853, 1
        %v855 = vmax.f32 %v853, %v854
        %v856 = vld [vmem:[#allocation2] sm:$0x1]
        %v857 = vmax.f32 %v856, %v855
        %v858 = vsub.f32 %v856, %v857
        %v859 = vmul.f32 %v858, 1.442695
        %v860 = vpow.pop %v859
        %v862 = vlaneseq
        %v863 = vshrl.u32 %v862, 7
        %v864 = vsub.s32 0, %v863
        %v865 = vrot.slane %v857, %v864
        %v867 = vsub.f32 %v849, %v865
        %v868 = vmul.f32 %v867, 1.442695
        %v869 = vpow.pop %v868
        %v870 = vld [vmem:[#allocation3] sm:$0x1]
        %v871 = vmul.f32 %v860, %v870
        %vm872 = vcmask 7168
        %v873 = vsel %vm872, %v869, 0.0
        %v874 = vrot.slane %v873, 4
        %v875 = vadd.f32 %v873, %v874
        %v876 = vrot.slane %v875, 2
        %v877 = vadd.f32 %v875, %v876
        %v878 = vrot.slane %v877, 1
        %v879 = vadd.f32 %v877, %v878
        %v880 = vadd.f32 %v871, %v879
        %vm881 = vcmask 0
        %882 = vst.msk [vmem:[#allocation3] sm:$0x1] %vm881, %v880
        %v883 = vld [vmem:[#allocation4] sm:$0x1]
        %885 = vset.pattern.permute.xlu0 0
        %886 = vperm.xlu0 %885, %v860
        %v887 = vpop.permute.xlu0 %886
        %v889 = vlaneseq
        %v890 = vshrl.u32 %v889, 7
        %v891 = vsub.s32 0, %v890
        %v892 = vrot.slane %v887, %v891
        %v893 = vmul.f32 %v892, %v883
        %895 = vset.pattern.permute.xlu0 0
        %896 = vperm.xlu0 %895, %v869
        %v897 = vpop.permute.xlu0 %896
        %v899 = vmul.f32 %v897, %v832
        %v900 = vrot.slane %v899, 4
        %v901 = vadd.f32 %v899, %v900
        %v902 = vrot.slane %v901, 2
        %v903 = vadd.f32 %v901, %v902
        %v904 = vrot.slane %v903, 1
        %v905 = vadd.f32 %v903, %v904
        %v906 = vadd.f32 %v893, %v905
        %907 = vst [vmem:[#allocation4] sm:$0x1] %v906
        %908 = vst.msk [vmem:[#allocation2] sm:$0x1] %vm881, %v857
        %p909 = scmp.eq.s32.totalorder %s42, 1
        // Predicated region
        $region101: #{tpu_custom_call.1} parent=59 // pred_check
          %p910 = pneg %p909
        $region102: #{tpu_custom_call.1} parent=59 // pred_check_branch
          %912 = sbr.rel (%p910) target = $region104
        $region103: #{tpu_custom_call.1} parent=59 // pred_region
          %v913 = vld [vmem:[#allocation3] sm:$0x1]
          %v914 = vrcp.pop %v913
          %v915 = vmul.f32 %v913, %v914
          %v916 = vsub.f32 2.0, %v915
          %v917 = vmul.f32 %v914, %v916
          %v918 = vld [vmem:[#allocation4] sm:$0x1]
          %920 = vset.pattern.permute.xlu0 0
          %921 = vperm.xlu0 %920, %v917
          %v922 = vpop.permute.xlu0 %921
          %v924 = vlaneseq
          %v925 = vshrl.u32 %v924, 7
          %v926 = vsub.s32 0, %v925
          %v927 = vrot.slane %v922, %v926
          %v928 = vmul.f32 %v918, %v927
          %v929 = vld [vmem:[#allocation20] sm:$0x1]
          %v930 = vadd.f32 %v928, %v929
          %931 = vst [vmem:[%s527] sm:$0x1] %v930
        $region104: #{tpu_custom_call.1} parent=59 // pred_fallthru
          _
        %s932 = sand.u32 %s274, 1
        %s933 = scalar_lea.sflag [#allocation8], %s932
        %s934 = sand.u32 %s274, 1
        %s935 = scalar_lea.vmem [#allocation21], %s934
        %s936 = sand.u32 %s302, 1
        %s937 = scalar_lea.sflag [#allocation23], %s936
        %s938 = sand.u32 %s302, 1
        %s939 = smul.addr %s938, 8
        %s940 = scalar_lea.vmem [#allocation22], %s939
        // Predicated region
        $region105: #{tpu_custom_call.1} parent=59 // pred_check
          %p941 = pneg %p284
        $region106: #{tpu_custom_call.1} parent=59 // pred_check_branch
          %943 = sbr.rel (%p941) target = $region108
        $region107: #{tpu_custom_call.1} parent=59 // pred_region
          %s945 = ssub.s32 16, 16
          %946 = vsyncadd %s933, %s945
          %s947 = smul.addr %s41, 16
          %s948 = scalar_lea.hbm %s10, %s947
          %s950 = sshll.u32 %s935, 4
          %s951 = int_to_ptr.vmem [resolvable:$true] %s950
          %953 = dma.vmem_to_hbm [thread:$0]  %s951, 16, %s948, %s933
        $region108: #{tpu_custom_call.1} parent=59 // pred_fallthru
          _
        // Predicated region
        $region109: #{tpu_custom_call.1} parent=59 // pred_check
          %p954 = pneg %p312
        $region110: #{tpu_custom_call.1} parent=59 // pred_check_branch
          %956 = sbr.rel (%p954) target = $region112
        $region111: #{tpu_custom_call.1} parent=59 // pred_region
          %s958 = ssub.s32 128, 128
          %959 = vsyncadd %s937, %s958
          %s960 = smul.addr %s41, 2
          %s961 = sadd.s32 %s42, %s960
          %s962 = smul.addr %s961, 128
          %s963 = scalar_lea.hbm %s11, %s962
          %s965 = sshll.u32 %s940, 4
          %s966 = int_to_ptr.vmem [resolvable:$true] %s965
          %968 = dma.vmem_to_hbm [thread:$0]  %s966, 128, %s963, %s937
        $region112: #{tpu_custom_call.1} parent=59 // pred_fallthru
          _
      $region60: #{tpu_custom_call.1} parent=5 // pred_fallthru
        _
      %p969 = scmp.le.s32.totalorder 2, %s32
      // Predicated region
      $region113: #{tpu_custom_call.1} parent=5 // pred_check
        %p970 = pneg %p969
      $region114: #{tpu_custom_call.1} parent=5 // pred_check_branch
        %972 = sbr.rel (%p970) target = $region116
      $region115: #{tpu_custom_call.1} parent=5 // pred_region
        %s973 = ssub.s32 %s32, 2
        // Predicated region
        $region117: #{tpu_custom_call.1} parent=115 // pred_check
          %p974 = pneg %p290
        $region118: #{tpu_custom_call.1} parent=115 // pred_check_branch
          %976 = sbr.rel (%p974) target = $region120
        $region119: #{tpu_custom_call.1} parent=115 // pred_region
          %s977 = sand.u32 %s275, 1
          %s978 = scalar_lea.sflag [#allocation8], %s977
          %s979 = sand.u32 %s275, 1
          %s980 = scalar_lea.vmem [#allocation21], %s979
          %981 = dma.done %s978, 16
        $region120: #{tpu_custom_call.1} parent=115 // pred_fallthru
          _
        // Predicated region
        $region121: #{tpu_custom_call.1} parent=115 // pred_check
          %p982 = pneg %p318
        $region122: #{tpu_custom_call.1} parent=115 // pred_check_branch
          %984 = sbr.rel (%p982) target = $region124
        $region123: #{tpu_custom_call.1} parent=115 // pred_region
          %s985 = sand.u32 %s303, 1
          %s986 = scalar_lea.sflag [#allocation23], %s985
          %s987 = sand.u32 %s303, 1
          %s988 = smul.addr %s987, 8
          %s989 = scalar_lea.vmem [#allocation22], %s988
          %990 = dma.done %s986, 128
        $region124: #{tpu_custom_call.1} parent=115 // pred_fallthru
          _
      $region116: #{tpu_custom_call.1} parent=5 // pred_fallthru
        _
    $region6: #{tpu_custom_call.1} parent=1 // loop_footer
      %s36 = sadd.s32 1, %s32
    $region7: #{tpu_custom_call.1} parent=1 // loop_footer_branch
      %31 = sbr.rel target = $region3
    $region8: #{tpu_custom_call.1} parent=1 // loop_exit
      _
    %991 = vsyncpa [#allocation7], 1
    %s992 = scalar_lea.sflag [#allocation7], 1
    %993 = vsyncpa %s992, 1
    %994 = vsyncpa [#allocation10], 1
    %995 = vsyncpa [#allocation13], 1
    %996 = vsyncpa [#allocation16], 1
    %997 = vsyncpa [#allocation19], 1
    %998 = vsyncpa [#allocation8], 1
    %s999 = scalar_lea.sflag [#allocation8], 1
    %1000 = vsyncpa %s999, 1
    %1001 = vsyncpa [#allocation23], 1
    %s1002 = scalar_lea.sflag [#allocation23], 1
    %1003 = vsyncpa %s1002, 1

// kernel: tpu_custom_call.1
$region0: #{tpu_custom_call.1}
  #allocation0 [shape = 'u32[]', space=smem, size = 0x4, offset = 0x4, fixed_abs, tag = 'smem constant byte address 0x4 - core index']
  #allocation1 [shape = 'u32[144,128]{1,0:T(1,128)}', space=vmem, size = 0x12000, scoped, tag = 'internal scratch']
  #allocation2 [shape = 'f32[1,1]{1,0:T(1,128)}', space=vmem, size = 0x200, scoped, tag = 'scratch operand']
  #allocation3 [shape = 'f32[1,1]{1,0:T(1,128)}', space=vmem, size = 0x200, scoped, tag = 'scratch operand']
  #allocation4 [shape = 'f32[1,128]{1,0:T(1,128)}', space=vmem, size = 0x200, scoped, tag = 'scratch operand']
  #allocation5 [shape = 'f32[1,1]{1,0:T(1,128)S(6)}', space=smem, size = 0x200, scoped, tag = 'scoped memory for tpu_custom_call.1']
  %s0 = inlined_call_operand.hbm [shape: f32[2,16,32], index: 0, kind: input, shape index: {}]
  %s1 = inlined_call_operand.hbm [shape: f32[32,32], index: 1, kind: input, shape index: {}]
  %s2 = inlined_call_operand.hbm [shape: f32[1,32], index: 2, kind: input, shape index: {}]
  %s3 = inlined_call_operand.hbm [shape: f32[1,32], index: 3, kind: input, shape index: {}]
  %s4 = inlined_call_operand.hbm [shape: f32[1,32], index: 4, kind: input, shape index: {}]
  %s5 = inlined_call_operand.hbm [shape: f32[32,384], index: 5, kind: input, shape index: {}]
  %s6 = inlined_call_operand.hbm [shape: f32[1,384], index: 6, kind: input, shape index: {}]
  %s7 = inlined_call_operand.hbm [shape: f32[1,128], index: 7, kind: input, shape index: {}]
  %s8 = inlined_call_operand.<no memory space> [shape: f32[1,1], index: 8, kind: input, shape index: {}]
  %s9 = inlined_call_operand.hbm [shape: f32[1,128], index: 9, kind: input, shape index: {}]
  %s10 = inlined_call_operand.hbm [shape: f32[2,1,128], index: 10, kind: output, shape index: {0}]
  %s11 = inlined_call_operand.hbm [shape: f32[2,16,128], index: 11, kind: output, shape index: {1}]
  %12 = xla_tuple %s10, %s11
  %s13 = sld [smem:[#allocation0]]
  $region125: #{tpu_custom_call.1} parent=0
    _
  %s15 = ssub.s32 1, %s13
  %s16 = scalar_select 0, %s15, %s13
  %17 = sst [smem:[#allocation5]] %s8
  $region1: #{tpu_custom_call.1} parent=0
    #allocation6 [shape = 'u8[8192]{0}', space=vmem, size = 0x2000, scoped, tag = 'input window, operand 0']
    #allocation7 [shape = 's32[2]{0}', space=sflag, size = 0x8, scoped, tag = 'scoped memory for tpu_custom_call.1']
    #allocation8 [shape = 's32[2]{0}', space=sflag, size = 0x8, scoped, tag = 'scoped memory for tpu_custom_call.1']
    #allocation9 [shape = 'u8[16384]{0}', space=vmem, size = 0x4000, scoped, tag = 'input window, operand 1, single buffered']
    #allocation10 [shape = 's32[1]{0}', space=sflag, size = 0x4, scoped, tag = 'scoped memory for tpu_custom_call.1']
    #allocation11 [shape = 'u8[512]{0}', space=vmem, size = 0x400, scoped, tag = 'input window, operand 2, single buffered']
    #allocation12 [shape = 'u8[512]{0}', space=vmem, size = 0x400, scoped, tag = 'input window, operand 3, single buffered']
    #allocation13 [shape = 's32[1]{0}', space=sflag, size = 0x4, scoped, tag = 'scoped memory for tpu_custom_call.1']
    #allocation14 [shape = 'u8[512]{0}', space=vmem, size = 0x400, scoped, tag = 'input window, operand 4, single buffered']
    #allocation15 [shape = 'u8[49152]{0}', space=vmem, size = 0xc000, scoped, tag = 'input window, operand 5, single buffered']
    #allocation16 [shape = 's32[1]{0}', space=sflag, size = 0x4, scoped, tag = 'scoped memory for tpu_custom_call.1']
    #allocation17 [shape = 'u8[1536]{0}', space=vmem, size = 0x800, scoped, tag = 'input window, operand 6, single buffered']
    #allocation18 [shape = 'u8[512]{0}', space=vmem, size = 0x400, scoped, tag = 'input window, operand 7, single buffered']
    #allocation19 [shape = 's32[1]{0}', space=sflag, size = 0x4, scoped, tag = 'scoped memory for tpu_custom_call.1']
    #allocation20 [shape = 'u8[512]{0}', space=vmem, size = 0x400, scoped, tag = 'input window, operand 9, single buffered']
    #allocation21 [shape = 'u8[1024]{0}', space=vmem, size = 0x400, scoped, tag = 'output window, operand 0']
    #allocation22 [shape = 'u8[8192]{0}', space=vmem, size = 0x2000, scoped, tag = 'output window, operand 1']
    #allocation23 [shape = 's32[2]{0}', space=sflag, size = 0x8, scoped, tag = 'scoped memory for tpu_custom_call.1']
    %18 = vsyncpa [#allocation7], 0
    %s19 = scalar_lea.sflag [#allocation7], 1
    %20 = vsyncpa %s19, 0
    %21 = vsyncpa [#allocation10], 0
    %22 = vsyncpa [#allocation13], 0
    %23 = vsyncpa [#allocation16], 0
    %24 = vsyncpa [#allocation19], 0
    %25 = vsyncpa [#allocation8], 0
    %s26 = scalar_lea.sflag [#allocation8], 1
    %27 = vsyncpa %s26, 0
    %28 = vsyncpa [#allocation23], 0
    %s29 = scalar_lea.sflag [#allocation23], 1
    %30 = vsyncpa %s29, 0
    loop: start=0, step=1, limit=6
    $region2: #{tpu_custom_call.1} parent=1 // loop_pre_header
      _
    $region3: #{tpu_custom_call.1} parent=1 // loop_header
      %s32 = sphi 0, %s36
      %p33 = scmp.ge.s32.totalorder %s32, 6
      %s39 = sphi 0, %s51
      %s40 = sphi 0, %s47
      %s41 = sphi 0, %s39
      %s42 = sphi 0, %s40
      %s43 = sphi 0, %s41
      %s44 = sphi 0, %s42
      %s56 = sphi 0, %s58
      %s59 = sphi 0, %s56
      %s60 = sphi 0, %s59
      %s76 = sphi 0, %s60
      %s80 = sphi 0, %s80
      %s82 = sphi 0, %s80
      %s83 = sphi 0, %s82
      %s97 = sphi 0, %s83
      %s101 = sphi 0, %s101
      %s103 = sphi 0, %s101
      %s104 = sphi 0, %s103
      %s118 = sphi 0, %s104
      %s122 = sphi 0, %s122
      %s124 = sphi 0, %s122
      %s125 = sphi 0, %s124
      %s139 = sphi 0, %s125
      %s143 = sphi 0, %s143
      %s145 = sphi 0, %s143
      %s146 = sphi 0, %s145
      %s160 = sphi 0, %s146
      %s164 = sphi 0, %s164
      %s166 = sphi 0, %s164
      %s167 = sphi 0, %s166
      %s181 = sphi 0, %s167
      %s185 = sphi 0, %s185
      %s187 = sphi 0, %s185
      %s188 = sphi 0, %s187
      %s202 = sphi 0, %s188
      %s206 = sphi 0, %s206
      %s208 = sphi 0, %s206
      %s209 = sphi 0, %s208
      %s223 = sphi 0, %s209
      %s227 = sphi 0, %s227
      %s229 = sphi 0, %s227
      %s230 = sphi 0, %s229
      %s244 = sphi 0, %s230
      %s248 = sphi 0, %s248
      %s250 = sphi 0, %s248
      %s251 = sphi 0, %s250
      %s265 = sphi 0, %s251
      %s271 = sphi 0, %s273
      %s274 = sphi 0, %s271
      %s275 = sphi 0, %s274
      %s291 = sphi 0, %s275
      %s299 = sphi 0, %s301
      %s302 = sphi 0, %s299
      %s303 = sphi 0, %s302
      %s319 = sphi 0, %s303
    $region4: #{tpu_custom_call.1} parent=1 // loop_header_branch
      %35 = sbr.rel (%p33) target = $region8
    $region5: #{tpu_custom_call.1} parent=1 // loop_body
      %s37 = ssub.s32 %s32, 1
      %s38 = ssub.s32 %s32, 2
      %s45 = sadd.s32 1, %s40
      %p46 = scmp.ge.s32.totalorder %s45, 2
      %s47 = scalar_select %p46, 0, %s45
      %s48 = sadd.s32 1, %s39
      %s49 = scalar_select %p46, %s48, %s39
      %p50 = scmp.ge.s32.totalorder %s49, 2
      %s51 = scalar_select %p50, 0, %s49
      %s52 = ssub.s32 %s39, %s51
      %s53 = ssub.s32 %s40, %s47
      %s54 = sor.u32 %s52, %s53
      %p55 = scmp.eq.s32.totalorder %s54, 0
      %s57 = sadd.s32 %s56, 1
      %s58 = scalar_select %p55, %s56, %s57
      %p61 = pneg %p55
      %p62 = scmp.eq.s32.totalorder %s32, 3
      %p63 = por %p61, %p62
      %p64 = scmp.ne.s32.totalorder %s56, %s59
      %p65 = scmp.eq.s32.totalorder %s32, 0
      %p66 = por %p64, %p65
      %p67 = scmp.ne.s32.totalorder %s56, %s59
      %p68 = scmp.eq.s32.totalorder %s37, 3
      %p69 = por %p67, %p68
      %p70 = scmp.ne.s32.totalorder %s59, %s60
      %p71 = scmp.eq.s32.totalorder %s37, 0
      %p72 = por %p70, %p71
      %p73 = scmp.ne.s32.totalorder %s59, %s60
      %p74 = scmp.eq.s32.totalorder %s38, 3
      %p75 = por %p73, %p74
      %p77 = scmp.ne.s32.totalorder %s60, %s76
      %p78 = scmp.eq.s32.totalorder %s38, 0
      %p79 = por %p77, %p78
      %s81 = sadd.s32 %s80, 1
      %p84 = scmp.eq.s32.totalorder %s32, 3
      %p85 = scmp.ne.s32.totalorder %s80, %s82
      %p86 = scmp.eq.s32.totalorder %s32, 0
      %p87 = por %p85, %p86
      %p88 = scmp.ne.s32.totalorder %s80, %s82
      %p89 = scmp.eq.s32.totalorder %s37, 3
      %p90 = por %p88, %p89
      %p91 = scmp.ne.s32.totalorder %s82, %s83
      %p92 = scmp.eq.s32.totalorder %s37, 0
      %p93 = por %p91, %p92
      %p94 = scmp.ne.s32.totalorder %s82, %s83
      %p95 = scmp.eq.s32.totalorder %s38, 3
      %p96 = por %p94, %p95
      %p98 = scmp.ne.s32.totalorder %s83, %s97
      %p99 = scmp.eq.s32.totalorder %s38, 0
      %p100 = por %p98, %p99
      %s102 = sadd.s32 %s101, 1
      %p105 = scmp.eq.s32.totalorder %s32, 3
      %p106 = scmp.ne.s32.totalorder %s101, %s103
      %p107 = scmp.eq.s32.totalorder %s32, 0
      %p108 = por %p106, %p107
      %p109 = scmp.ne.s32.totalorder %s101, %s103
      %p110 = scmp.eq.s32.totalorder %s37, 3
      %p111 = por %p109, %p110
      %p112 = scmp.ne.s32.totalorder %s103, %s104
      %p113 = scmp.eq.s32.totalorder %s37, 0
      %p114 = por %p112, %p113
      %p115 = scmp.ne.s32.totalorder %s103, %s104
      %p116 = scmp.eq.s32.totalorder %s38, 3
      %p117 = por %p115, %p116
      %p119 = scmp.ne.s32.totalorder %s104, %s118
      %p120 = scmp.eq.s32.totalorder %s38, 0
      %p121 = por %p119, %p120
      %s123 = sadd.s32 %s122, 1
      %p126 = scmp.eq.s32.totalorder %s32, 3
      %p127 = scmp.ne.s32.totalorder %s122, %s124
      %p128 = scmp.eq.s32.totalorder %s32, 0
      %p129 = por %p127, %p128
      %p130 = scmp.ne.s32.totalorder %s122, %s124
      %p131 = scmp.eq.s32.totalorder %s37, 3
      %p132 = por %p130, %p131
      %p133 = scmp.ne.s32.totalorder %s124, %s125
      %p134 = scmp.eq.s32.totalorder %s37, 0
      %p135 = por %p133, %p134
      %p136 = scmp.ne.s32.totalorder %s124, %s125
      %p137 = scmp.eq.s32.totalorder %s38, 3
      %p138 = por %p136, %p137
      %p140 = scmp.ne.s32.totalorder %s125, %s139
      %p141 = scmp.eq.s32.totalorder %s38, 0
      %p142 = por %p140, %p141
      %s144 = sadd.s32 %s143, 1
      %p147 = scmp.eq.s32.totalorder %s32, 3
      %p148 = scmp.ne.s32.totalorder %s143, %s145
      %p149 = scmp.eq.s32.totalorder %s32, 0
      %p150 = por %p148, %p149
      %p151 = scmp.ne.s32.totalorder %s143, %s145
      %p152 = scmp.eq.s32.totalorder %s37, 3
      %p153 = por %p151, %p152
      %p154 = scmp.ne.s32.totalorder %s145, %s146
      %p155 = scmp.eq.s32.totalorder %s37, 0
      %p156 = por %p154, %p155
      %p157 = scmp.ne.s32.totalorder %s145, %s146
      %p158 = scmp.eq.s32.totalorder %s38, 3
      %p159 = por %p157, %p158
      %p161 = scmp.ne.s32.totalorder %s146, %s160
      %p162 = scmp.eq.s32.totalorder %s38, 0
      %p163 = por %p161, %p162
      %s165 = sadd.s32 %s164, 1
      %p168 = scmp.eq.s32.totalorder %s32, 3
      %p169 = scmp.ne.s32.totalorder %s164, %s166
      %p170 = scmp.eq.s32.totalorder %s32, 0
      %p171 = por %p169, %p170
      %p172 = scmp.ne.s32.totalorder %s164, %s166
      %p173 = scmp.eq.s32.totalorder %s37, 3
      %p174 = por %p172, %p173
      %p175 = scmp.ne.s32.totalorder %s166, %s167
      %p176 = scmp.eq.s32.totalorder %s37, 0
      %p177 = por %p175, %p176
      %p178 = scmp.ne.s32.totalorder %s166, %s167
      %p179 = scmp.eq.s32.totalorder %s38, 3
      %p180 = por %p178, %p179
      %p182 = scmp.ne.s32.totalorder %s167, %s181
      %p183 = scmp.eq.s32.totalorder %s38, 0
      %p184 = por %p182, %p183
      %s186 = sadd.s32 %s185, 1
      %p189 = scmp.eq.s32.totalorder %s32, 3
      %p190 = scmp.ne.s32.totalorder %s185, %s187
      %p191 = scmp.eq.s32.totalorder %s32, 0
      %p192 = por %p190, %p191
      %p193 = scmp.ne.s32.totalorder %s185, %s187
      %p194 = scmp.eq.s32.totalorder %s37, 3
      %p195 = por %p193, %p194
      %p196 = scmp.ne.s32.totalorder %s187, %s188
      %p197 = scmp.eq.s32.totalorder %s37, 0
      %p198 = por %p196, %p197
      %p199 = scmp.ne.s32.totalorder %s187, %s188
      %p200 = scmp.eq.s32.totalorder %s38, 3
      %p201 = por %p199, %p200
      %p203 = scmp.ne.s32.totalorder %s188, %s202
      %p204 = scmp.eq.s32.totalorder %s38, 0
      %p205 = por %p203, %p204
      %s207 = sadd.s32 %s206, 1
      %p210 = scmp.eq.s32.totalorder %s32, 3
      %p211 = scmp.ne.s32.totalorder %s206, %s208
      %p212 = scmp.eq.s32.totalorder %s32, 0
      %p213 = por %p211, %p212
      %p214 = scmp.ne.s32.totalorder %s206, %s208
      %p215 = scmp.eq.s32.totalorder %s37, 3
      %p216 = por %p214, %p215
      %p217 = scmp.ne.s32.totalorder %s208, %s209
      %p218 = scmp.eq.s32.totalorder %s37, 0
      %p219 = por %p217, %p218
      %p220 = scmp.ne.s32.totalorder %s208, %s209
      %p221 = scmp.eq.s32.totalorder %s38, 3
      %p222 = por %p220, %p221
      %p224 = scmp.ne.s32.totalorder %s209, %s223
      %p225 = scmp.eq.s32.totalorder %s38, 0
      %p226 = por %p224, %p225
      %s228 = sadd.s32 %s227, 1
      %p231 = scmp.eq.s32.totalorder %s32, 3
      %p232 = scmp.ne.s32.totalorder %s227, %s229
      %p233 = scmp.eq.s32.totalorder %s32, 0
      %p234 = por %p232, %p233
      %p235 = scmp.ne.s32.totalorder %s227, %s229
      %p236 = scmp.eq.s32.totalorder %s37, 3
      %p237 = por %p235, %p236
      %p238 = scmp.ne.s32.totalorder %s229, %s230
      %p239 = scmp.eq.s32.totalorder %s37, 0
      %p240 = por %p238, %p239
      %p241 = scmp.ne.s32.totalorder %s229, %s230
      %p242 = scmp.eq.s32.totalorder %s38, 3
      %p243 = por %p241, %p242
      %p245 = scmp.ne.s32.totalorder %s230, %s244
      %p246 = scmp.eq.s32.totalorder %s38, 0
      %p247 = por %p245, %p246
      %s249 = sadd.s32 %s248, 1
      %p252 = scmp.eq.s32.totalorder %s32, 3
      %p253 = scmp.ne.s32.totalorder %s248, %s250
      %p254 = scmp.eq.s32.totalorder %s32, 0
      %p255 = por %p253, %p254
      %p256 = scmp.ne.s32.totalorder %s248, %s250
      %p257 = scmp.eq.s32.totalorder %s37, 3
      %p258 = por %p256, %p257
      %p259 = scmp.ne.s32.totalorder %s250, %s251
      %p260 = scmp.eq.s32.totalorder %s37, 0
      %p261 = por %p259, %p260
      %p262 = scmp.ne.s32.totalorder %s250, %s251
      %p263 = scmp.eq.s32.totalorder %s38, 3
      %p264 = por %p262, %p263
      %p266 = scmp.ne.s32.totalorder %s251, %s265
      %p267 = scmp.eq.s32.totalorder %s38, 0
      %p268 = por %p266, %p267
      %s269 = ssub.s32 %s39, %s51
      %p270 = scmp.eq.s32.totalorder %s269, 0
      %s272 = sadd.s32 %s271, 1
      %s273 = scalar_select %p270, %s271, %s272
      %p276 = pneg %p270
      %p277 = scmp.eq.s32.totalorder %s32, 3
      %p278 = por %p276, %p277
      %p279 = scmp.ne.s32.totalorder %s271, %s274
      %p280 = scmp.eq.s32.totalorder %s32, 0
      %p281 = por %p279, %p280
      %p282 = scmp.ne.s32.totalorder %s271, %s274
      %p283 = scmp.eq.s32.totalorder %s37, 3
      %p284 = por %p282, %p283
      %p285 = scmp.ne.s32.totalorder %s274, %s275
      %p286 = scmp.eq.s32.totalorder %s37, 0
      %p287 = por %p285, %p286
      %p288 = scmp.ne.s32.totalorder %s274, %s275
      %p289 = scmp.eq.s32.totalorder %s38, 3
      %p290 = por %p288, %p289
      %p292 = scmp.ne.s32.totalorder %s275, %s291
      %p293 = scmp.eq.s32.totalorder %s38, 0
      %p294 = por %p292, %p293
      %s295 = ssub.s32 %s39, %s51
      %s296 = ssub.s32 %s40, %s47
      %s297 = sor.u32 %s295, %s296
      %p298 = scmp.eq.s32.totalorder %s297, 0
      %s300 = sadd.s32 %s299, 1
      %s301 = scalar_select %p298, %s299, %s300
      %p304 = pneg %p298
      %p305 = scmp.eq.s32.totalorder %s32, 3
      %p306 = por %p304, %p305
      %p307 = scmp.ne.s32.totalorder %s299, %s302
      %p308 = scmp.eq.s32.totalorder %s32, 0
      %p309 = por %p307, %p308
      %p310 = scmp.ne.s32.totalorder %s299, %s302
      %p311 = scmp.eq.s32.totalorder %s37, 3
      %p312 = por %p310, %p311
      %p313 = scmp.ne.s32.totalorder %s302, %s303
      %p314 = scmp.eq.s32.totalorder %s37, 0
      %p315 = por %p313, %p314
      %p316 = scmp.ne.s32.totalorder %s302, %s303
      %p317 = scmp.eq.s32.totalorder %s38, 3
      %p318 = por %p316, %p317
      %p320 = scmp.ne.s32.totalorder %s303, %s319
      %p321 = scmp.eq.s32.totalorder %s38, 0
      %p322 = por %p320, %p321
      %p323 = scmp.le.s32.totalorder 1, %s32
      %p324 = scmp.lt.s32.totalorder %s32, 5
      %p325 = pnand %p323, %p324
      %p326 = pneg %p325
      // Predicated region
      $region9: #{tpu_custom_call.1} parent=5 // pred_check
        _
      $region10: #{tpu_custom_call.1} parent=5 // pred_check_branch
        %328 = sbr.rel (%p325) target = $region12
      $region11: #{tpu_custom_call.1} parent=5 // pred_region
        %s329 = ssub.s32 %s32, 1
        // Predicated region
        $region13: #{tpu_custom_call.1} parent=11 // pred_check
          %p330 = pneg %p93
        $region14: #{tpu_custom_call.1} parent=11 // pred_check_branch
          %332 = sbr.rel (%p330) target = $region16
        $region15: #{tpu_custom_call.1} parent=11 // pred_region
          %s334 = ssub.s32 512, 512
          %335 = vsyncadd [#allocation10], %s334
          %s336 = sshll.u32 [#allocation9], 4
          %s337 = int_to_ptr.vmem [resolvable:$true] %s336
          %342 = dma.hbm_to_vmem [thread:$0]  %s1, 512, %s337, [#allocation10], 128, 128, 8
        $region16: #{tpu_custom_call.1} parent=11 // pred_fallthru
          _
        // Predicated region
        $region17: #{tpu_custom_call.1} parent=11 // pred_check
          %p343 = pneg %p114
        $region18: #{tpu_custom_call.1} parent=11 // pred_check_branch
          %345 = sbr.rel (%p343) target = $region20
        $region19: #{tpu_custom_call.1} parent=11 // pred_region
          %s347 = ssub.s32 16, 16
          %348 = vsyncadd [#allocation10], %s347
          %s350 = sshll.u32 [#allocation11], 4
          %s351 = int_to_ptr.vmem [resolvable:$true] %s350
          %353 = dma.hbm_to_vmem [thread:$0]  %s2, 16, %s351, [#allocation10]
        $region20: #{tpu_custom_call.1} parent=11 // pred_fallthru
          _
        // Predicated region
        $region21: #{tpu_custom_call.1} parent=11 // pred_check
          %p354 = pneg %p135
        $region22: #{tpu_custom_call.1} parent=11 // pred_check_branch
          %356 = sbr.rel (%p354) target = $region24
        $region23: #{tpu_custom_call.1} parent=11 // pred_region
          %s358 = ssub.s32 16, 16
          %359 = vsyncadd [#allocation13], %s358
          %s361 = sshll.u32 [#allocation12], 4
          %s362 = int_to_ptr.vmem [resolvable:$true] %s361
          %364 = dma.hbm_to_vmem [thread:$0]  %s3, 16, %s362, [#allocation13]
        $region24: #{tpu_custom_call.1} parent=11 // pred_fallthru
          _
        // Predicated region
        $region25: #{tpu_custom_call.1} parent=11 // pred_check
          %p365 = pneg %p156
        $region26: #{tpu_custom_call.1} parent=11 // pred_check_branch
          %367 = sbr.rel (%p365) target = $region28
        $region27: #{tpu_custom_call.1} parent=11 // pred_region
          %s369 = ssub.s32 16, 16
          %370 = vsyncadd [#allocation13], %s369
          %s372 = sshll.u32 [#allocation14], 4
          %s373 = int_to_ptr.vmem [resolvable:$true] %s372
          %375 = dma.hbm_to_vmem [thread:$0]  %s4, 16, %s373, [#allocation13]
        $region28: #{tpu_custom_call.1} parent=11 // pred_fallthru
          _
        // Predicated region
        $region29: #{tpu_custom_call.1} parent=11 // pred_check
          %p376 = pneg %p177
        $region30: #{tpu_custom_call.1} parent=11 // pred_check_branch
          %378 = sbr.rel (%p376) target = $region32
        $region31: #{tpu_custom_call.1} parent=11 // pred_region
          %s380 = ssub.s32 1536, 1536
          %381 = vsyncadd [#allocation16], %s380
          %s382 = sshll.u32 [#allocation15], 4
          %s383 = int_to_ptr.vmem [resolvable:$true] %s382
          %388 = dma.hbm_to_vmem [thread:$0]  %s5, 1536, %s383, [#allocation16], 384, 384, 24
        $region32: #{tpu_custom_call.1} parent=11 // pred_fallthru
          _
        // Predicated region
        $region33: #{tpu_custom_call.1} parent=11 // pred_check
          %p389 = pneg %p198
        $region34: #{tpu_custom_call.1} parent=11 // pred_check_branch
          %391 = sbr.rel (%p389) target = $region36
        $region35: #{tpu_custom_call.1} parent=11 // pred_region
          %s393 = ssub.s32 48, 48
          %394 = vsyncadd [#allocation16], %s393
          %s396 = sshll.u32 [#allocation17], 4
          %s397 = int_to_ptr.vmem [resolvable:$true] %s396
          %399 = dma.hbm_to_vmem [thread:$0]  %s6, 48, %s397, [#allocation16]
        $region36: #{tpu_custom_call.1} parent=11 // pred_fallthru
          _
        // Predicated region
        $region37: #{tpu_custom_call.1} parent=11 // pred_check
          %p400 = pneg %p219
        $region38: #{tpu_custom_call.1} parent=11 // pred_check_branch
          %402 = sbr.rel (%p400) target = $region40
        $region39: #{tpu_custom_call.1} parent=11 // pred_region
          %s404 = ssub.s32 16, 16
          %405 = vsyncadd [#allocation19], %s404
          %s407 = sshll.u32 [#allocation18], 4
          %s408 = int_to_ptr.vmem [resolvable:$true] %s407
          %410 = dma.hbm_to_vmem [thread:$0]  %s7, 16, %s408, [#allocation19]
        $region40: #{tpu_custom_call.1} parent=11 // pred_fallthru
          _
        // Predicated region
        $region41: #{tpu_custom_call.1} parent=11 // pred_check
          %p411 = pneg %p240
        $region42: #{tpu_custom_call.1} parent=11 // pred_check_branch
          %413 = sbr.rel (%p411) target = $region44
        $region43: #{tpu_custom_call.1} parent=11 // pred_region
          _
        $region44: #{tpu_custom_call.1} parent=11 // pred_fallthru
          _
        // Predicated region
        $region45: #{tpu_custom_call.1} parent=11 // pred_check
          %p414 = pneg %p261
        $region46: #{tpu_custom_call.1} parent=11 // pred_check_branch
          %416 = sbr.rel (%p414) target = $region48
        $region47: #{tpu_custom_call.1} parent=11 // pred_region
          %s418 = ssub.s32 16, 16
          %419 = vsyncadd [#allocation19], %s418
          %s421 = sshll.u32 [#allocation20], 4
          %s422 = int_to_ptr.vmem [resolvable:$true] %s421
          %424 = dma.hbm_to_vmem [thread:$0]  %s9, 16, %s422, [#allocation19]
        $region48: #{tpu_custom_call.1} parent=11 // pred_fallthru
          _
      $region12: #{tpu_custom_call.1} parent=5 // pred_fallthru
        _
      %p425 = scmp.lt.s32.totalorder %s32, 4
      // Predicated region
      $region49: #{tpu_custom_call.1} parent=5 // pred_check
        %p426 = pneg %p425
      $region50: #{tpu_custom_call.1} parent=5 // pred_check_branch
        %428 = sbr.rel (%p426) target = $region52
      $region51: #{tpu_custom_call.1} parent=5 // pred_region
        // Predicated region
        $region53: #{tpu_custom_call.1} parent=51 // pred_check
          %p429 = pneg %p66
        $region54: #{tpu_custom_call.1} parent=51 // pred_check_branch
          %431 = sbr.rel (%p429) target = $region56
        $region55: #{tpu_custom_call.1} parent=51 // pred_region
          %s432 = sand.u32 %s56, 1
          %s433 = scalar_lea.sflag [#allocation7], %s432
          %s434 = sand.u32 %s56, 1
          %s435 = smul.addr %s434, 8
          %s436 = scalar_lea.vmem [#allocation6], %s435
          %s438 = ssub.s32 128, 128
          %439 = vsyncadd %s433, %s438
          %s440 = smul.addr %s39, 2
          %s441 = sadd.s32 %s40, %s440
          %s442 = smul.addr %s441, 128
          %s443 = scalar_lea.hbm %s0, %s442
          %s445 = sshll.u32 %s436, 4
          %s446 = int_to_ptr.vmem [resolvable:$true] %s445
          %448 = dma.hbm_to_vmem [thread:$0]  %s443, 128, %s446, %s433
        $region56: #{tpu_custom_call.1} parent=51 // pred_fallthru
          _
      $region52: #{tpu_custom_call.1} parent=5 // pred_fallthru
        _
      %p449 = scmp.le.s32.totalorder 1, %s32
      %p450 = scmp.lt.s32.totalorder %s32, 5
      %p451 = pnand %p449, %p450
      %p452 = pneg %p451
      // Predicated region
      $region57: #{tpu_custom_call.1} parent=5 // pred_check
        _
      $region58: #{tpu_custom_call.1} parent=5 // pred_check_branch
        %454 = sbr.rel (%p451) target = $region60
      $region59: #{tpu_custom_call.1} parent=5 // pred_region
        %s455 = ssub.s32 %s32, 1
        %s456 = sand.u32 %s59, 1
        %s457 = scalar_lea.sflag [#allocation7], %s456
        %s458 = sand.u32 %s59, 1
        %s459 = smul.addr %s458, 8
        %s460 = scalar_lea.vmem [#allocation6], %s459
        // Predicated region
        $region61: #{tpu_custom_call.1} parent=59 // pred_check
          %p461 = pneg %p72
        $region62: #{tpu_custom_call.1} parent=59 // pred_check_branch
          %463 = sbr.rel (%p461) target = $region64
        $region63: #{tpu_custom_call.1} parent=59 // pred_region
          %464 = dma.done %s457, 128
        $region64: #{tpu_custom_call.1} parent=59 // pred_fallthru
          _
        // Predicated region
        $region65: #{tpu_custom_call.1} parent=59 // pred_check
          %p465 = pneg %p93
        $region66: #{tpu_custom_call.1} parent=59 // pred_check_branch
          %467 = sbr.rel (%p465) target = $region68
        $region67: #{tpu_custom_call.1} parent=59 // pred_region
          %468 = dma.done [#allocation10], 512
        $region68: #{tpu_custom_call.1} parent=59 // pred_fallthru
          _
        // Predicated region
        $region69: #{tpu_custom_call.1} parent=59 // pred_check
          %p469 = pneg %p114
        $region70: #{tpu_custom_call.1} parent=59 // pred_check_branch
          %471 = sbr.rel (%p469) target = $region72
        $region71: #{tpu_custom_call.1} parent=59 // pred_region
          %472 = dma.done [#allocation10], 16
        $region72: #{tpu_custom_call.1} parent=59 // pred_fallthru
          _
        // Predicated region
        $region73: #{tpu_custom_call.1} parent=59 // pred_check
          %p473 = pneg %p135
        $region74: #{tpu_custom_call.1} parent=59 // pred_check_branch
          %475 = sbr.rel (%p473) target = $region76
        $region75: #{tpu_custom_call.1} parent=59 // pred_region
          %476 = dma.done [#allocation13], 16
        $region76: #{tpu_custom_call.1} parent=59 // pred_fallthru
          _
        // Predicated region
        $region77: #{tpu_custom_call.1} parent=59 // pred_check
          %p477 = pneg %p156
        $region78: #{tpu_custom_call.1} parent=59 // pred_check_branch
          %479 = sbr.rel (%p477) target = $region80
        $region79: #{tpu_custom_call.1} parent=59 // pred_region
          %480 = dma.done [#allocation13], 16
        $region80: #{tpu_custom_call.1} parent=59 // pred_fallthru
          _
        // Predicated region
        $region81: #{tpu_custom_call.1} parent=59 // pred_check
          %p481 = pneg %p177
        $region82: #{tpu_custom_call.1} parent=59 // pred_check_branch
          %483 = sbr.rel (%p481) target = $region84
        $region83: #{tpu_custom_call.1} parent=59 // pred_region
          %484 = dma.done [#allocation16], 1536
        $region84: #{tpu_custom_call.1} parent=59 // pred_fallthru
          _
        // Predicated region
        $region85: #{tpu_custom_call.1} parent=59 // pred_check
          %p485 = pneg %p198
        $region86: #{tpu_custom_call.1} parent=59 // pred_check_branch
          %487 = sbr.rel (%p485) target = $region88
        $region87: #{tpu_custom_call.1} parent=59 // pred_region
          %488 = dma.done [#allocation16], 48
        $region88: #{tpu_custom_call.1} parent=59 // pred_fallthru
          _
        // Predicated region
        $region89: #{tpu_custom_call.1} parent=59 // pred_check
          %p489 = pneg %p219
        $region90: #{tpu_custom_call.1} parent=59 // pred_check_branch
          %491 = sbr.rel (%p489) target = $region92
        $region91: #{tpu_custom_call.1} parent=59 // pred_region
          %492 = dma.done [#allocation19], 16
        $region92: #{tpu_custom_call.1} parent=59 // pred_fallthru
          _
        // Predicated region
        $region93: #{tpu_custom_call.1} parent=59 // pred_check
          %p493 = pneg %p261
        $region94: #{tpu_custom_call.1} parent=59 // pred_check_branch
          %495 = sbr.rel (%p493) target = $region96
        $region95: #{tpu_custom_call.1} parent=59 // pred_region
          %496 = dma.done [#allocation19], 16
        $region96: #{tpu_custom_call.1} parent=59 // pred_fallthru
          _
        %s497 = sand.u32 %s59, 1
        %s498 = scalar_lea.sflag [#allocation7], %s497
        %s499 = sand.u32 %s59, 1
        %s500 = smul.addr %s499, 8
        %s501 = scalar_lea.vmem [#allocation6], %s500
        %p502 = pneg %p72
        %p503 = pneg %p69
        %p504 = pneg %p93
        %p505 = pneg %p90
        %p506 = pneg %p114
        %p507 = pneg %p111
        %p508 = pneg %p135
        %p509 = pneg %p132
        %p510 = pneg %p156
        %p511 = pneg %p153
        %p512 = pneg %p177
        %p513 = pneg %p174
        %p514 = pneg %p198
        %p515 = pneg %p195
        %p516 = pneg %p219
        %p517 = pneg %p216
        %p518 = pneg %p240
        %p519 = pneg %p237
        %p520 = pneg %p261
        %p521 = pneg %p258
        %p522 = pneg %p287
        %p523 = pneg %p284
        %s524 = sand.u32 %s274, 1
        %s525 = scalar_lea.sflag [#allocation8], %s524
        %s526 = sand.u32 %s274, 1
        %s527 = scalar_lea.vmem [#allocation21], %s526
        %p528 = pneg %p315
        %p529 = pneg %p312
        %s530 = sand.u32 %s302, 1
        %s531 = scalar_lea.sflag [#allocation23], %s530
        %s532 = sand.u32 %s302, 1
        %s533 = smul.addr %s532, 8
        %s534 = scalar_lea.vmem [#allocation22], %s533
        %p535 = scmp.eq.s32.totalorder %s42, 0
        // Predicated region
        $region97: #{tpu_custom_call.1} parent=59 // pred_check
          %p536 = pneg %p535
        $region98: #{tpu_custom_call.1} parent=59 // pred_check_branch
          %538 = sbr.rel (%p536) target = $region100
        $region99: #{tpu_custom_call.1} parent=59 // pred_region
          %vm539 = vcmask 0
          %540 = vst.msk [vmem:[#allocation2] sm:$0x1] %vm539, -inf
          %541 = vst.msk [vmem:[#allocation3] sm:$0x1] %vm539, 0.0
          %542 = vst [vmem:[#allocation4] sm:$0x1] 0.0
        $region100: #{tpu_custom_call.1} parent=59 // pred_fallthru
          _
        %v543 = vld [vmem:[%s460] sm:$0xff]
        %v544 = vld [vmem:[#allocation9] sm:$0xff]
        %v545 = vld [vmem:[#allocation9 + $0x8] sm:$0xff]
        %v546 = vld [vmem:[#allocation9 + $0x10] sm:$0xff]
        %v547 = vld [vmem:[#allocation9 + $0x18] sm:$0xff]
        %v548 = vld [vmem:[#allocation11] sm:$0x1]
        %v550 = vlaneseq
        %v551 = vshrl.u32 %v550, 7
        %v552 = vsub.s32 0, %v551
        %v553 = vrot.slane %v548, %v552
        %vm555 = vcmask 261120
        %v557 = vsel %vm555, %v543, 0
        %559 = vmatprep.subr.mxu0 0.0
        %560 = vmatpush1.msra.mxu0 %v544
        %561 = vmatprep.subr.mxu0 0.0
        %562 = vmatpush1.msra.mxu0 %v545
        %563 = vmatprep.subr.mxu0 0.0
        %564 = vmatpush1.msra.mxu0 %v546
        %565 = vmatprep.subr.mxu0 0.0
        %566 = vmatpush1.msra.mxu0 %v547
        %567 = vmatprep.subr.mxu0 0.0
        %568 = vmatpush1.msra.mxu0 0.0
        %569 = vmatprep.subr.mxu0 0.0
        %570 = vmatpush1.msra.mxu0 0.0
        %571 = vmatprep.subr.mxu0 0.0
        %572 = vmatpush1.msra.mxu0 0.0
        %573 = vmatprep.subr.mxu0 0.0
        %574 = vmatpush1.msra.mxu0 0.0
        %575 = vmatprep.subr.mxu0 0.0
        %576 = vmatpush1.msra.mxu0 0.0
        %577 = vmatprep.subr.mxu0 0.0
        %578 = vmatpush1.msra.mxu0 0.0
        %579 = vmatprep.subr.mxu0 0.0
        %580 = vmatpush1.msra.mxu0 0.0
        %581 = vmatprep.subr.mxu0 0.0
        %582 = vmatpush1.msra.mxu0 0.0
        %583 = vmatprep.subr.mxu0 0.0
        %584 = vmatpush1.msra.mxu0 0.0
        %585 = vmatprep.subr.mxu0 0.0
        %586 = vmatpush1.msra.mxu0 0.0
        %587 = vmatprep.subr.mxu0 0.0
        %588 = vmatpush1.msra.mxu0 0.0
        %589 = vmatprep.subr.mxu0 0.0
        %590 = vmatpush1.msra.mxu0 0.0
        %591 = vmatprep.subr.mxu0 0.0
        %592 = vmatpush1.msra.mxu0 0.0
        %593 = vmatprep.subr.mxu0 0.0
        %594 = vmatpush1.msra.mxu0 0.0
        %595 = vmatprep.subr.mxu0 0.0
        %596 = vmatpush1.msra.mxu0 0.0
        %597 = vmatprep.subr.mxu0 0.0
        %598 = vmatpush1.msra.mxu0 0.0
        %599 = vmatprep.subr.mxu0 0.0
        %600 = vmatpush1.msra.mxu0 0.0
        %601 = vmatprep.subr.mxu0 0.0
        %602 = vmatpush1.msra.mxu0 0.0
        %603 = vmatprep.subr.mxu0 0.0
        %604 = vmatpush1.msra.mxu0 0.0
        %605 = vmatprep.subr.mxu0 0.0
        %606 = vmatpush1.msra.mxu0 0.0
        %607 = vmatprep.subr.mxu0 0.0
        %608 = vmatpush1.msra.mxu0 0.0
        %609 = vmatprep.subr.mxu0 0.0
        %610 = vmatpush1.msra.mxu0 0.0
        %611 = vmatprep.subr.mxu0 0.0
        %612 = vmatpush1.msra.mxu0 0.0
        %613 = vmatprep.subr.mxu0 0.0
        %614 = vmatpush1.msra.mxu0 0.0
        %615 = vmatprep.subr.mxu0 0.0
        %616 = vmatpush1.msra.mxu0 0.0
        %617 = vmatprep.subr.mxu0 0.0
        %618 = vmatpush1.msra.mxu0 0.0
        %619 = vmatprep.subr.mxu0 0.0
        %620 = vmatpush1.msra.mxu0 0.0
        %621 = vmatprep.subr.mxu0 0.0
        %622 = vmatpush1.msra.mxu0 0.0
        %623 = vmatprep.mubr.f32.mxu0 0.0
        %624 = vmatmul.mubr.f32.gmra.mrb[0].mxu0 %v557
        %v625 = vpop.f32.mrb[0].mxu0
        %v626 = vadd.f32 %v553, %v625
        %v627 = vpop.f32.mrb[0].mxu0
        %628 = vdwg.mxu0
        %v629 = vsel %vm555, %v626, 0.0
        %630 = vadd.xlane.f32.xlu0 %v629
        %v631 = vpop.xlane.xlu0 %630
        %v632 = vrcp.pop 32.0
        %v633 = vmul.f32 %v631, %v632
        %v634 = vmul.f32 %v626, %v626
        %v635 = vsel %vm555, %v634, 0.0
        %636 = vadd.xlane.f32.xlu0 %v635
        %v637 = vpop.xlane.xlu0 %636
        %v638 = vmul.f32 %v637, %v632
        %v639 = vmul.f32 %v633, %v633
        %v640 = vsub.f32 %v638, %v639
        %v641 = vmax.f32 %v640, 0.0
        %v642 = vsub.f32 %v626, %v633
        %v643 = vadd.f32 %v641, 1e-05
        %v644 = vrsqrt.pop %v643
        %v645 = vmul.f32 %v642, %v644
        %v646 = vld [vmem:[#allocation12] sm:$0x1]
        %v648 = vlaneseq
        %v649 = vshrl.u32 %v648, 7
        %v650 = vsub.s32 0, %v649
        %v651 = vrot.slane %v646, %v650
        %v653 = vmul.f32 %v645, %v651
        %v654 = vld [vmem:[#allocation14] sm:$0x1]
        %v656 = vlaneseq
        %v657 = vshrl.u32 %v656, 7
        %v658 = vsub.s32 0, %v657
        %v659 = vrot.slane %v654, %v658
        %v661 = vadd.f32 %v653, %v659
        %v662 = vld [vmem:[#allocation15] sm:$0xff]
        %v663 = vld [vmem:[#allocation15 + $0x8] sm:$0xff]
        %v664 = vld [vmem:[#allocation15 + $0x10] sm:$0xff]
        %v665 = vld [vmem:[#allocation15 + $0x18] sm:$0xff]
        %v666 = vld [vmem:[#allocation15 + $0x20] sm:$0xff]
        %v667 = vld [vmem:[#allocation15 + $0x28] sm:$0xff]
        %v668 = vld [vmem:[#allocation15 + $0x30] sm:$0xff]
        %v669 = vld [vmem:[#allocation15 + $0x38] sm:$0xff]
        %v670 = vld [vmem:[#allocation15 + $0x40] sm:$0xff]
        %v671 = vld [vmem:[#allocation15 + $0x48] sm:$0xff]
        %v672 = vld [vmem:[#allocation15 + $0x50] sm:$0xff]
        %v673 = vld [vmem:[#allocation15 + $0x58] sm:$0xff]
        %v674 = vld [vmem:[#allocation17] sm:$0x7]
        %v676 = vlaneseq
        %v677 = vshrl.u32 %v676, 7
        %v678 = vsub.s32 0, %v677
        %v679 = vrot.slane %v674, %v678
        %v680 = vlaneseq
        %v681 = vshrl.u32 %v680, 7
        %v682 = vsub.s32 1, %v681
        %v683 = vrot.slane %v674, %v682
        %v684 = vlaneseq
        %v685 = vshrl.u32 %v684, 7
        %v686 = vsub.s32 2, %v685
        %v687 = vrot.slane %v674, %v686
        %v692 = vsel %vm555, %v661, 0
        %694 = vmatprep.subr.mxu0 %v663
        %695 = vmatpush1.msra.mxu0 %v662
        %696 = vmatprep.subr.mxu0 %v666
        %697 = vmatpush1.msra.mxu0 %v665
        %698 = vmatprep.subr.mxu0 %v669
        %699 = vmatpush1.msra.mxu0 %v668
        %700 = vmatprep.subr.mxu0 %v672
        %701 = vmatpush1.msra.mxu0 %v671
        %702 = vmatprep.subr.mxu0 0.0
        %703 = vmatpush1.msra.mxu0 0.0
        %704 = vmatprep.subr.mxu0 0.0
        %705 = vmatpush1.msra.mxu0 0.0
        %706 = vmatprep.subr.mxu0 0.0
        %707 = vmatpush1.msra.mxu0 0.0
        %708 = vmatprep.subr.mxu0 0.0
        %709 = vmatpush1.msra.mxu0 0.0
        %710 = vmatprep.subr.mxu0 0.0
        %711 = vmatpush1.msra.mxu0 0.0
        %712 = vmatprep.subr.mxu0 0.0
        %713 = vmatpush1.msra.mxu0 0.0
        %714 = vmatprep.subr.mxu0 0.0
        %715 = vmatpush1.msra.mxu0 0.0
        %716 = vmatprep.subr.mxu0 0.0
        %717 = vmatpush1.msra.mxu0 0.0
        %718 = vmatprep.subr.mxu0 0.0
        %719 = vmatpush1.msra.mxu0 0.0
        %720 = vmatprep.subr.mxu0 0.0
        %721 = vmatpush1.msra.mxu0 0.0
        %722 = vmatprep.subr.mxu0 0.0
        %723 = vmatpush1.msra.mxu0 0.0
        %724 = vmatprep.subr.mxu0 0.0
        %725 = vmatpush1.msra.mxu0 0.0
        %726 = vmatprep.subr.mxu0 0.0
        %727 = vmatpush1.msra.mxu0 0.0
        %728 = vmatprep.subr.mxu0 0.0
        %729 = vmatpush1.msra.mxu0 0.0
        %730 = vmatprep.subr.mxu0 0.0
        %731 = vmatpush1.msra.mxu0 0.0
        %732 = vmatprep.subr.mxu0 0.0
        %733 = vmatpush1.msra.mxu0 0.0
        %734 = vmatprep.subr.mxu0 0.0
        %735 = vmatpush1.msra.mxu0 0.0
        %736 = vmatprep.subr.mxu0 0.0
        %737 = vmatpush1.msra.mxu0 0.0
        %738 = vmatprep.subr.mxu0 0.0
        %739 = vmatpush1.msra.mxu0 0.0
        %740 = vmatprep.subr.mxu0 0.0
        %741 = vmatpush1.msra.mxu0 0.0
        %742 = vmatprep.subr.mxu0 0.0
        %743 = vmatpush1.msra.mxu0 0.0
        %744 = vmatprep.subr.mxu0 0.0
        %745 = vmatpush1.msra.mxu0 0.0
        %746 = vmatprep.subr.mxu0 0.0
        %747 = vmatpush1.msra.mxu0 0.0
        %748 = vmatprep.subr.mxu0 0.0
        %749 = vmatpush1.msra.mxu0 0.0
        %750 = vmatprep.subr.mxu0 0.0
        %751 = vmatpush1.msra.mxu0 0.0
        %752 = vmatprep.subr.mxu0 0.0
        %753 = vmatpush1.msra.mxu0 0.0
        %754 = vmatprep.subr.mxu0 0.0
        %755 = vmatpush1.msra.mxu0 0.0
        %756 = vmatprep.subr.mxu0 0.0
        %757 = vmatpush1.msra.mxu0 0.0
        %758 = vmatprep.mubr.f32.mxu0 0.0
        %759 = vmatmul.mubr.f32.gmra.mrb[0].mxu0 %v692
        %v760 = vpop.f32.mrb[0].mxu0
        %v761 = vadd.f32 %v679, %v760
        %v762 = vpop.f32.mrb[0].mxu0
        %v763 = vadd.f32 %v683, %v762
        %764 = vdwg.mxu0
        %765 = vmatprep.subr.mxu0 0.0
        %766 = vmatpush1.msra.mxu0 %v664
        %767 = vmatprep.subr.mxu0 0.0
        %768 = vmatpush1.msra.mxu0 %v667
        %769 = vmatprep.subr.mxu0 0.0
        %770 = vmatpush1.msra.mxu0 %v670
        %771 = vmatprep.subr.mxu0 0.0
        %772 = vmatpush1.msra.mxu0 %v673
        %773 = vmatprep.subr.mxu0 0.0
        %774 = vmatpush1.msra.mxu0 0.0
        %775 = vmatprep.subr.mxu0 0.0
        %776 = vmatpush1.msra.mxu0 0.0
        %777 = vmatprep.subr.mxu0 0.0
        %778 = vmatpush1.msra.mxu0 0.0
        %779 = vmatprep.subr.mxu0 0.0
        %780 = vmatpush1.msra.mxu0 0.0
        %781 = vmatprep.subr.mxu0 0.0
        %782 = vmatpush1.msra.mxu0 0.0
        %783 = vmatprep.subr.mxu0 0.0
        %784 = vmatpush1.msra.mxu0 0.0
        %785 = vmatprep.subr.mxu0 0.0
        %786 = vmatpush1.msra.mxu0 0.0
        %787 = vmatprep.subr.mxu0 0.0
        %788 = vmatpush1.msra.mxu0 0.0
        %789 = vmatprep.subr.mxu0 0.0
        %790 = vmatpush1.msra.mxu0 0.0
        %791 = vmatprep.subr.mxu0 0.0
        %792 = vmatpush1.msra.mxu0 0.0
        %793 = vmatprep.subr.mxu0 0.0
        %794 = vmatpush1.msra.mxu0 0.0
        %795 = vmatprep.subr.mxu0 0.0
        %796 = vmatpush1.msra.mxu0 0.0
        %797 = vmatprep.subr.mxu0 0.0
        %798 = vmatpush1.msra.mxu0 0.0
        %799 = vmatprep.subr.mxu0 0.0
        %800 = vmatpush1.msra.mxu0 0.0
        %801 = vmatprep.subr.mxu0 0.0
        %802 = vmatpush1.msra.mxu0 0.0
        %803 = vmatprep.subr.mxu0 0.0
        %804 = vmatpush1.msra.mxu0 0.0
        %805 = vmatprep.subr.mxu0 0.0
        %806 = vmatpush1.msra.mxu0 0.0
        %807 = vmatprep.subr.mxu0 0.0
        %808 = vmatpush1.msra.mxu0 0.0
        %809 = vmatprep.subr.mxu0 0.0
        %810 = vmatpush1.msra.mxu0 0.0
        %811 = vmatprep.subr.mxu0 0.0
        %812 = vmatpush1.msra.mxu0 0.0
        %813 = vmatprep.subr.mxu0 0.0
        %814 = vmatpush1.msra.mxu0 0.0
        %815 = vmatprep.subr.mxu0 0.0
        %816 = vmatpush1.msra.mxu0 0.0
        %817 = vmatprep.subr.mxu0 0.0
        %818 = vmatpush1.msra.mxu0 0.0
        %819 = vmatprep.subr.mxu0 0.0
        %820 = vmatpush1.msra.mxu0 0.0
        %821 = vmatprep.subr.mxu0 0.0
        %822 = vmatpush1.msra.mxu0 0.0
        %823 = vmatprep.subr.mxu0 0.0
        %824 = vmatpush1.msra.mxu0 0.0
        %825 = vmatprep.subr.mxu0 0.0
        %826 = vmatpush1.msra.mxu0 0.0
        %827 = vmatprep.subr.mxu0 0.0
        %828 = vmatpush1.msra.mxu0 0.0
        %829 = vmatprep.mubr.f32.mxu0 0.0
        %830 = vmatmul.mubr.f32.gmra.mrb[0].mxu0 %v692
        %v831 = vpop.f32.mrb[0].mxu0
        %v832 = vadd.f32 %v687, %v831
        %v833 = vpop.f32.mrb[0].mxu0
        %834 = vdwg.mxu0
        %v835 = vtanh.pop %v763
        %836 = vst [vmem:[%s534] sm:$0xff] %v761
        %v837 = vld [vmem:[#allocation18] sm:$0x1]
        %v839 = vlaneseq
        %v840 = vshrl.u32 %v839, 7
        %v841 = vsub.s32 0, %v840
        %v842 = vrot.slane %v837, %v841
        %v844 = vmul.f32 %v835, %v842
        %845 = vadd.xlane.f32.xlu0 %v844
        %v846 = vpop.xlane.xlu0 %845
        %s847 = sld [smem:[#allocation5]]
        %v848 = vstv %s847
        %v849 = vadd.f32 %v846, %v848
        %v850 = vrot.slane %v849, 4
        %v851 = vmax.f32 %v849, %v850
        %v852 = vrot.slane %v851, 2
        %v853 = vmax.f32 %v851, %v852
        %v854 = vrot.slane %v853, 1
        %v855 = vmax.f32 %v853, %v854
        %v856 = vld [vmem:[#allocation2] sm:$0x1]
        %v857 = vmax.f32 %v856, %v855
        %v858 = vsub.f32 %v856, %v857
        %v859 = vmul.f32 %v858, 1.442695
        %v860 = vpow.pop %v859
        %v862 = vlaneseq
        %v863 = vshrl.u32 %v862, 7
        %v864 = vsub.s32 0, %v863
        %v865 = vrot.slane %v857, %v864
        %v867 = vsub.f32 %v849, %v865
        %v868 = vmul.f32 %v867, 1.442695
        %v869 = vpow.pop %v868
        %v870 = vld [vmem:[#allocation3] sm:$0x1]
        %v871 = vmul.f32 %v860, %v870
        %vm872 = vcmask 7168
        %v873 = vsel %vm872, %v869, 0.0
        %v874 = vrot.slane %v873, 4
        %v875 = vadd.f32 %v873, %v874
        %v876 = vrot.slane %v875, 2
        %v877 = vadd.f32 %v875, %v876
        %v878 = vrot.slane %v877, 1
        %v879 = vadd.f32 %v877, %v878
        %v880 = vadd.f32 %v871, %v879
        %vm881 = vcmask 0
        %882 = vst.msk [vmem:[#allocation3] sm:$0x1] %vm881, %v880
        %v883 = vld [vmem:[#allocation4] sm:$0x1]
        %885 = vset.pattern.permute.xlu0 0
        %886 = vperm.xlu0 %885, %v860
        %v887 = vpop.permute.xlu0 %886
        %v889 = vlaneseq
        %v890 = vshrl.u32 %v889, 7
        %v891 = vsub.s32 0, %v890
        %v892 = vrot.slane %v887, %v891
        %v893 = vmul.f32 %v892, %v883
        %895 = vset.pattern.permute.xlu0 0
        %896 = vperm.xlu0 %895, %v869
        %v897 = vpop.permute.xlu0 %896
        %v899 = vmul.f32 %v897, %v832
        %v900 = vrot.slane %v899, 4
        %v901 = vadd.f32 %v899, %v900
        %v902 = vrot.slane %v901, 2
        %v903 = vadd.f32 %v901, %v902
        %v904 = vrot.slane %v903, 1
        %v905 = vadd.f32 %v903, %v904
        %v906 = vadd.f32 %v893, %v905
        %907 = vst [vmem:[#allocation4] sm:$0x1] %v906
        %908 = vst.msk [vmem:[#allocation2] sm:$0x1] %vm881, %v857
        %p909 = scmp.eq.s32.totalorder %s42, 1
        // Predicated region
        $region101: #{tpu_custom_call.1} parent=59 // pred_check
          %p910 = pneg %p909
        $region102: #{tpu_custom_call.1} parent=59 // pred_check_branch
          %912 = sbr.rel (%p910) target = $region104
        $region103: #{tpu_custom_call.1} parent=59 // pred_region
          %v913 = vld [vmem:[#allocation3] sm:$0x1]
          %v914 = vrcp.pop %v913
          %v915 = vmul.f32 %v913, %v914
          %v916 = vsub.f32 2.0, %v915
          %v917 = vmul.f32 %v914, %v916
          %v918 = vld [vmem:[#allocation4] sm:$0x1]
          %920 = vset.pattern.permute.xlu0 0
          %921 = vperm.xlu0 %920, %v917
          %v922 = vpop.permute.xlu0 %921
          %v924 = vlaneseq
          %v925 = vshrl.u32 %v924, 7
          %v926 = vsub.s32 0, %v925
          %v927 = vrot.slane %v922, %v926
          %v928 = vmul.f32 %v918, %v927
          %v929 = vld [vmem:[#allocation20] sm:$0x1]
          %v930 = vadd.f32 %v928, %v929
          %931 = vst [vmem:[%s527] sm:$0x1] %v930
        $region104: #{tpu_custom_call.1} parent=59 // pred_fallthru
          _
        %s932 = sand.u32 %s274, 1
        %s933 = scalar_lea.sflag [#allocation8], %s932
        %s934 = sand.u32 %s274, 1
        %s935 = scalar_lea.vmem [#allocation21], %s934
        %s936 = sand.u32 %s302, 1
        %s937 = scalar_lea.sflag [#allocation23], %s936
        %s938 = sand.u32 %s302, 1
        %s939 = smul.addr %s938, 8
        %s940 = scalar_lea.vmem [#allocation22], %s939
        // Predicated region
        $region105: #{tpu_custom_call.1} parent=59 // pred_check
          %p941 = pneg %p284
        $region106: #{tpu_custom_call.1} parent=59 // pred_check_branch
          %943 = sbr.rel (%p941) target = $region108
        $region107: #{tpu_custom_call.1} parent=59 // pred_region
          %s945 = ssub.s32 16, 16
          %946 = vsyncadd %s933, %s945
          %s947 = smul.addr %s41, 16
          %s948 = scalar_lea.hbm %s10, %s947
          %s950 = sshll.u32 %s935, 4
          %s951 = int_to_ptr.vmem [resolvable:$true] %s950
          %953 = dma.vmem_to_hbm [thread:$0]  %s951, 16, %s948, %s933
        $region108: #{tpu_custom_call.1} parent=59 // pred_fallthru
          _
        // Predicated region
        $region109: #{tpu_custom_call.1} parent=59 // pred_check
          %p954 = pneg %p312
        $region110: #{tpu_custom_call.1} parent=59 // pred_check_branch
          %956 = sbr.rel (%p954) target = $region112
        $region111: #{tpu_custom_call.1} parent=59 // pred_region
          %s958 = ssub.s32 128, 128
          %959 = vsyncadd %s937, %s958
          %s960 = smul.addr %s41, 2
          %s961 = sadd.s32 %s42, %s960
          %s962 = smul.addr %s961, 128
          %s963 = scalar_lea.hbm %s11, %s962
          %s965 = sshll.u32 %s940, 4
          %s966 = int_to_ptr.vmem [resolvable:$true] %s965
          %968 = dma.vmem_to_hbm [thread:$0]  %s966, 128, %s963, %s937
        $region112: #{tpu_custom_call.1} parent=59 // pred_fallthru
          _
      $region60: #{tpu_custom_call.1} parent=5 // pred_fallthru
        _
      %p969 = scmp.le.s32.totalorder 2, %s32
      // Predicated region
      $region113: #{tpu_custom_call.1} parent=5 // pred_check
        %p970 = pneg %p969
      $region114: #{tpu_custom_call.1} parent=5 // pred_check_branch
        %972 = sbr.rel (%p970) target = $region116
      $region115: #{tpu_custom_call.1} parent=5 // pred_region
        %s973 = ssub.s32 %s32, 2
        // Predicated region
        $region117: #{tpu_custom_call.1} parent=115 // pred_check
          %p974 = pneg %p290
        $region118: #{tpu_custom_call.1} parent=115 // pred_check_branch
          %976 = sbr.rel (%p974) target = $region120
        $region119: #{tpu_custom_call.1} parent=115 // pred_region
          %s977 = sand.u32 %s275, 1
          %s978 = scalar_lea.sflag [#allocation8], %s977
          %s979 = sand.u32 %s275, 1
          %s980 = scalar_lea.vmem [#allocation21], %s979
          %981 = dma.done %s978, 16
        $region120: #{tpu_custom_call.1} parent=115 // pred_fallthru
          _
        // Predicated region
        $region121: #{tpu_custom_call.1} parent=115 // pred_check
          %p982 = pneg %p318
        $region122: #{tpu_custom_call.1} parent=115 // pred_check_branch
          %984 = sbr.rel (%p982) target = $region124
        $region123: #{tpu_custom_call.1} parent=115 // pred_region
          %s985 = sand.u32 %s303, 1
          %s986 = scalar_lea.sflag [#allocation23], %s985
          %s987 = sand.u32 %s303, 1
          %s988 = smul.addr %s987, 8
          %s989 = scalar_lea.vmem [#allocation22], %s988
          %990 = dma.done %s986, 128
        $region124: #{tpu_custom_call.1} parent=115 // pred_fallthru
          _
      $region116: #{tpu_custom_call.1} parent=5 // pred_fallthru
        _
    $region6: #{tpu_custom_call.1} parent=1 // loop_footer
      %s36 = sadd.s32 1, %s32
    $region7: #{tpu_custom_call.1} parent=1 // loop_footer_branch
      %31 = sbr.rel target = $region3
    $region8: #{tpu_custom_call.1} parent=1 // loop_exit
      _
    %991 = vsyncpa [#allocation7], 1
    %s992 = scalar_lea.sflag [#allocation7], 1
    %993 = vsyncpa %s992, 1
    %994 = vsyncpa [#allocation10], 1
    %995 = vsyncpa [#allocation13], 1
    %996 = vsyncpa [#allocation16], 1
    %997 = vsyncpa [#allocation19], 1
    %998 = vsyncpa [#allocation8], 1
    %s999 = scalar_lea.sflag [#allocation8], 1
    %1000 = vsyncpa %s999, 1
    %1001 = vsyncpa [#allocation23], 1
    %s1002 = scalar_lea.sflag [#allocation23], 1
    %1003 = vsyncpa %s1002, 1

</llo_original>
